<compile_context>
chip_gen: v6e
topology: v6e:2x2x1
jax: 0.10.0
libtpu: 0.0.40
codegen_flags: <defaults>
</compile_context>

<pallas_src>
import functools
import math

import jax
import jax.numpy as jnp
from jax.experimental import pallas as pl
from jax.experimental.pallas import tpu as pltpu


# ---------------------------------------------------------------------------
# Padding-aware VMEM accounting + chip heuristics.
# ---------------------------------------------------------------------------
_LANE = 128
_SUBLANE = {4: 8, 2: 16, 1: 32}


def _round_up(x, m):
    return ((x + m - 1) // m) * m


def _padded_vmem_bytes(shape, dtype):
    """VMEM bytes for one buffer: last dim -> 128 lanes, 2nd-to-last -> sublanes."""
    itemsize = jnp.dtype(dtype).itemsize
    if len(shape) == 0:
        return 4
    if len(shape) == 1:
        return _round_up(int(shape[0]) * itemsize, _LANE * 4)
    sub = _SUBLANE.get(itemsize, 8)
    lead = 1
    for s in shape[:-2]:
        lead *= int(s)
    return lead * _round_up(int(shape[-2]), sub) * _round_up(int(shape[-1]), _LANE) * itemsize


@functools.lru_cache(maxsize=1)
def _chip_info():
    """Returns (physical VMEM bytes per TensorCore, grid shared across >1 core)."""
    vmem = None
    try:
        vmem = int(pltpu.get_tpu_info().vmem_capacity_bytes)
    except Exception:
        vmem = None
    kind = ""
    try:
        kind = (jax.devices()[0].device_kind or "").lower()
    except Exception:
        pass
    # v5e / v6e have a single TensorCore per chip -> the grid is a sequential
    # loop, so do NOT force >=2 grid steps there.  v4 / v5p / v7x (and unknown)
    # are treated as multi-core.
    single_tc = any(t in kind for t in ("v5 lite", "v5e", "v5lite", "v6", "trillium"))
    if vmem is None:
        big_vmem = single_tc or ("v4" in kind) or ("v5" in kind) or ("v6" in kind)
        vmem = 128 * 2 ** 20 if big_vmem else 64 * 2 ** 20
    if "v7" in kind or "tpu7" in kind:
        vmem = min(vmem, 64 * 2 ** 20)      # v7x: 64 MiB / TensorCore
    vmem = min(vmem, 128 * 2 ** 20)
    return vmem, (not single_tc)


def _dense_footprint(nb, C, HW, dtype):
    """Padding-aware VMEM estimate for `nb` images on the fused dense path."""
    f32 = jnp.float32
    io = 4 * 2 * nb * _padded_vmem_bytes((C, HW), dtype)            # q,k,v,out, double-buffered
    tmp = nb * (4 * _padded_vmem_bytes((HW, HW), f32)               # scores / masked / exp / probs
                + 4 * _padded_vmem_bytes((C, HW), f32))             # f32 casts + branch outputs
    fixed = 4 * _padded_vmem_bytes((HW, HW), jnp.int32)             # mask-building temporaries
    fixed += 4 * _padded_vmem_bytes((1, HW), jnp.int32)             # row/col id inputs
    return io + tmp + fixed


def _pick_nb(N, C, HW, dtype, vmem_phys, multi_tc):
    budget = (vmem_phys * 6) // 10                                  # leave compiler headroom
    fixed = _dense_footprint(0, C, HW, dtype)
    per_img = _dense_footprint(1, C, HW, dtype) - fixed
    nb = max(1, min(N, (budget - fixed) // max(per_img, 1)))
    if multi_tc and N >= 2:
        nb = min(nb, max(1, N // 2))        # >=2 grid steps so both TensorCores get work
    return int(nb)


def _heads_footprint(tb, L, D, dtype, with_residual):
    f32 = jnp.float32
    n_io = 5 if with_residual else 4
    io = n_io * 2 * tb * _padded_vmem_bytes((L, D), dtype)
    tmp = tb * (3 * _padded_vmem_bytes((L, L), f32) + 3 * _padded_vmem_bytes((L, D), f32))
    return io + tmp


def _pick_tb(BH, L, D, dtype, with_residual, vmem_phys, multi_tc):
    budget = (vmem_phys * 6) // 10
    per = _heads_footprint(1, L, D, dtype, with_residual)
    tb = max(1, min(BH, budget // max(per, 1)))
    if multi_tc and BH >= 2:
        tb = min(tb, max(1, BH // 2))
    return int(tb)


def _vmem_limit(need, vmem_phys):
    cap = min((vmem_phys * 3) // 4, 100 * 2 ** 20)                  # <=48 MiB on v7x
    return int(min(cap, max(32 * 2 ** 20, 2 * need)))


# ---------------------------------------------------------------------------
# Fused kernel (small C): both branches + add on lane-dense (nb, C, H*W) blocks.
# ---------------------------------------------------------------------------
def _fused_dense_kernel(q_ref, k_ref, v_ref, row_ref, col_ref, o_ref, *,
                        scale, require_scaling):
    """One block = nb images, laid out (nb, C, H*W) (lane-dense last dim).

    s[n, p, g] = sum_c q[n, c, p] * k[n, c, g]  over flattened positions p, g.
    column branch (CWCA): softmax over keys in the same ROW    (mask same_row)
    row    branch (CWRA): softmax over keys in the same COLUMN (mask same_col)
    Output is the sum of both branches, written once, lane-dense.
    """
    nb, C, HW = q_ref.shape
    f32 = jnp.float32

    q = q_ref[...]
    k = k_ref[...]
    v = v_ref[...]
    if q.dtype != f32:                       # keep score/softmax math in f32 (v5e: no bf16 VPU)
        q = q.astype(f32)
        k = k.astype(f32)
    if require_scaling:
        q = q * scale                        # fold 1/sqrt(n) into q once (both branches)

    # C-deep score contraction: tiny C on this path (dispatch-bounded), so a
    # C-term VPU accumulation beats feeding the MXU a C-deep contraction and
    # needs no in-kernel transpose/reshape and no (C,HW,HW) broadcast temps.
    s = q[:, 0, :, None] * k[:, 0, None, :]
    for c in range(1, C):
        s = s + q[:, c, :, None] * k[:, c, None, :]

    # Branch masks from prefetched position ids (computed in the wrapper to
    # avoid vector integer div/mod inside the kernel).
    row_ids = row_ref[...]                   # (1, HW) int32 : p // W
    col_ids = col_ref[...]                   # (1, HW) int32 : p %  W
    same_row = row_ids[:, :, None] == row_ids[:, None, :]   # (1, HW, HW)
    same_col = col_ids[:, :, None] == col_ids[:, None, :]

    # MXU operand dtype: keep bf16 operands (f32 accumulation) for bf16 inputs.
    mm_dtype = v.dtype if v.dtype == jnp.bfloat16 else f32
    vm = v.astype(mm_dtype)

    def branch(mask):
        if require_scaling:
            sm = jnp.where(mask, s, -1e30)
            sm = sm - jnp.max(sm, axis=-1, keepdims=True)
            e = jnp.exp(sm)
            p = e * pl.reciprocal(jnp.sum(e, axis=-1, keepdims=True), approx=False)
        else:
            # DotProductAttention: no softmax at all; masked-out keys contribute 0.
            p = jnp.where(mask, s, 0.0)
        # out[n, c, p] = sum_g p[n, p, g] * v[n, c, g]  (HW-deep contraction -> MXU)
        return jnp.einsum("ncg,npg->ncp", vm, p.astype(mm_dtype),
                          preferred_element_type=f32)

    out = branch(same_row) + branch(same_col)      # column branch + row branch
    o_ref[...] = out.astype(o_ref.dtype)


def _fused_dense_call(q, k, v, *, scale, require_scaling):
    N, C, H, W = q.shape
    HW = H * W
    vmem_phys, multi_tc = _chip_info()

    nb = _pick_nb(N, C, HW, q.dtype, vmem_phys, multi_tc)
    grid = (pl.cdiv(N, nb),)                      # cdiv grid: no divisibility loops

    q2 = q.reshape(N, C, HW)                      # free for contiguous NCHW
    k2 = k.reshape(N, C, HW)
    v2 = v.reshape(N, C, HW)
    pos = jnp.arange(HW, dtype=jnp.int32)
    row_ids = (pos // W).reshape(1, HW)
    col_ids = (pos % W).reshape(1, HW)

    blk = pl.BlockSpec((nb, C, HW), lambda i: (i, 0, 0))
    ids = pl.BlockSpec((1, HW), lambda i: (0, 0))

    vmem_limit = _vmem_limit(_dense_footprint(nb, C, HW, q.dtype), vmem_phys)
    kernel = functools.partial(_fused_dense_kernel, scale=scale,
                               require_scaling=require_scaling)
    out = pl.pallas_call(
        kernel,
        out_shape=jax.ShapeDtypeStruct((N, C, HW), q.dtype),
        grid=grid,
        in_specs=[blk, blk, blk, ids, ids],
        out_specs=blk,
        compiler_params=pltpu.CompilerParams(
            dimension_semantics=("parallel",),
            vmem_limit_bytes=vmem_limit),
    )(q2, k2, v2, row_ids, col_ids)
    return out.reshape(N, C, H, W)


# ---------------------------------------------------------------------------
# Fallback (large C): head-batched MXU attention; the column-branch call also
# consumes the row-branch result so the final add is fused into the kernel.
# ---------------------------------------------------------------------------
def _heads_attn_kernel(*refs, scale, require_scaling, add_residual):
    if add_residual:
        q_ref, k_ref, v_ref, r_ref, o_ref = refs
    else:
        q_ref, k_ref, v_ref, o_ref = refs
        r_ref = None
    f32 = jnp.float32
    q = q_ref[...]
    k = k_ref[...]
    v = v_ref[...]
    # bf16 operands on the MXU (f32 accumulation) when inputs are bf16; f32 otherwise.
    mm_dtype = q.dtype if q.dtype == jnp.bfloat16 else f32

    qs = q.astype(f32)
    if require_scaling:
        qs = qs * scale                                 # fold 1/sqrt(n) into q
    s = jnp.einsum("bld,bmd->blm", qs.astype(mm_dtype), k.astype(mm_dtype),
                   preferred_element_type=f32)
    if require_scaling:
        s = s - jnp.max(s, axis=-1, keepdims=True)
        e = jnp.exp(s)
        p = e * pl.reciprocal(jnp.sum(e, axis=-1, keepdims=True), approx=False)
    else:
        p = s
    o = jnp.einsum("blm,bmd->bld", p.astype(mm_dtype), v.astype(mm_dtype),
                   preferred_element_type=f32)
    if add_residual:
        o = o + r_ref[...].astype(f32)                  # fused out_r + out_c
    o_ref[...] = o.astype(o_ref.dtype)


def _heads_attention(q, k, v, residual, *, scale, require_scaling):
    BH, L, D = q.shape
    vmem_phys, multi_tc = _chip_info()
    with_res = residual is not None
    tb = _pick_tb(BH, L, D, q.dtype, with_res, vmem_phys, multi_tc)
    grid = (pl.cdiv(BH, tb),)
    blk = pl.BlockSpec((tb, L, D), lambda b: (b, 0, 0))
    vmem_limit = _vmem_limit(_heads_footprint(tb, L, D, q.dtype, with_res), vmem_phys)
    kernel = functools.partial(_heads_attn_kernel, scale=scale,
                               require_scaling=require_scaling,
                               add_residual=with_res)
    args = (q, k, v) + ((residual,) if with_res else ())
    return pl.pallas_call(
        kernel,
        out_shape=jax.ShapeDtypeStruct((BH, L, D), q.dtype),
        grid=grid,
        in_specs=[blk] * len(args),
        out_specs=blk,
        compiler_params=pltpu.CompilerParams(
            dimension_semantics=("parallel",),
            vmem_limit_bytes=vmem_limit),
    )(*args)


# ---------------------------------------------------------------------------
# Public entry point (matches ChannelWiseRowColumnAttention.forward, NCHW in/out)
# ---------------------------------------------------------------------------
@functools.partial(jax.jit, static_argnames=("require_scaling",))
def channel_wise_row_column_attention(q, k, v, require_scaling=True):
    N, C, H, W = q.shape
    n = k.shape[-1]                      # = W of the NCHW tensor, used for BOTH branches
    scale = 1.0 / math.sqrt(n)           # (faithful to the PyTorch module)
    HW = H * W

    vmem_phys, _ = _chip_info()
    dense_ok = (C <= 32 and
                _dense_footprint(1, C, HW, q.dtype) <= (vmem_phys * 6) // 10)
    if dense_ok:
        # Fully fused: one pallas_call, q/k/v read once, out_r + out_c written once.
        return _fused_dense_call(q, k, v, scale=scale,
                                 require_scaling=require_scaling)

    # Large-C fallback: head-batched MXU attention per branch (head batching
    # amortizes the small L against the 128/256-wide MXU tile).
    # TODO(synk): a structured fused kernel for the small-C / very-large-HW
    # corner (per-row / per-column blocking instead of the dense HW x HW mask)
    # would remove these wrapper transposes as well.
    q_r = jnp.transpose(q, (0, 3, 2, 1)).reshape(N * W, H, C)
    k_r = jnp.transpose(k, (0, 3, 2, 1)).reshape(N * W, H, C)
    v_r = jnp.transpose(v, (0, 3, 2, 1)).reshape(N * W, H, C)
    out_r = _heads_attention(q_r, k_r, v_r, None, scale=scale,
                             require_scaling=require_scaling)        # (N*W, H, C)
    # Re-layout the row-branch output into the column-branch head layout so the
    # final add is fused into the column-branch kernel (no separate add pass).
    out_r_c = jnp.transpose(out_r.reshape(N, W, H, C), (0, 2, 1, 3)).reshape(N * H, W, C)

    q_c = jnp.transpose(q, (0, 2, 3, 1)).reshape(N * H, W, C)
    k_c = jnp.transpose(k, (0, 2, 3, 1)).reshape(N * H, W, C)
    v_c = jnp.transpose(v, (0, 2, 3, 1)).reshape(N * H, W, C)
    out = _heads_attention(q_c, k_c, v_c, out_r_c, scale=scale,
                           require_scaling=require_scaling)          # out_c + out_r
    return jnp.transpose(out.reshape(N, H, W, C), (0, 3, 1, 2))


# ---------------------------------------------------------------------------
# Pure-JAX reference mirroring the PyTorch forward, for validation.
# ---------------------------------------------------------------------------
def _reference(q, k, v, require_scaling=True):
    n = k.shape[-1]

    def attn(qq, kk, vv):
        s = jnp.einsum("nxld,nxmd->nxlm", qq, kk)
        if require_scaling:
            s = jax.nn.softmax(s / math.sqrt(n), axis=-1)
        return jnp.einsum("nxlm,nxmd->nxld", s, vv)

    q_r = jnp.transpose(q, (0, 3, 2, 1))
    k_r = jnp.transpose(k, (0, 3, 2, 1))
    v_r = jnp.transpose(v, (0, 3, 2, 1))
    out_r = jnp.transpose(attn(q_r, k_r, v_r), (0, 3, 2, 1))

    q_c = jnp.transpose(q, (0, 2, 3, 1))
    k_c = jnp.transpose(k, (0, 2, 3, 1))
    v_c = jnp.transpose(v, (0, 2, 3, 1))
    out_c = jnp.transpose(attn(q_c, k_c, v_c), (0, 3, 1, 2))
    return out_r + out_c


if __name__ == "__main__":
    N, C, H, W = 2, 4, 16, 16
    kq, kk, kv = jax.random.split(jax.random.PRNGKey(0), 3)
    q = jax.random.normal(kq, (N, C, H, W), dtype=jnp.float32)
    k = jax.random.normal(kk, (N, C, H, W), dtype=jnp.float32)
    v = jax.random.normal(kv, (N, C, H, W), dtype=jnp.float32)

    out = jax.block_until_ready(
        channel_wise_row_column_attention(q, k, v, require_scaling=True))
    ref = _reference(q, k, v, require_scaling=True)
    assert out.shape == (N, C, H, W)
    assert jnp.allclose(out, ref, atol=1e-4, rtol=1e-4), "scaled path mismatch vs reference"

    out_ns = jax.block_until_ready(
        channel_wise_row_column_attention(q, k, v, require_scaling=False))
    ref_ns = _reference(q, k, v, require_scaling=False)
    assert jnp.allclose(out_ns, ref_ns, atol=1e-4, rtol=1e-4), "unscaled path mismatch vs reference"

    print("KERNEL_OK")
</pallas_src>

<mosaic_0001>
module attributes {stable_mosaic.version = 11 : i64} {
  func.func @_fused_dense_kernel(%arg0: i32, %arg1: memref<1x4x256xf32, #tpu.memory_space<vmem>>, %arg2: memref<1x4x256xf32, #tpu.memory_space<vmem>>, %arg3: memref<1x4x256xf32, #tpu.memory_space<vmem>>, %arg4: memref<1x256xi32, #tpu.memory_space<vmem>>, %arg5: memref<1x256xi32, #tpu.memory_space<vmem>>, %arg6: memref<1x4x256xf32, #tpu.memory_space<vmem>>) attributes {dimension_semantics = [#tpu.dimension_semantics<parallel>], iteration_bounds = array<i64: 2>, scalar_prefetch = 0 : i64, scratch_operands = 0 : i64, tpu.core_type = #tpu.core_type<tc>, window_params = [{transform_indices = @transform_0, window_bounds = array<i64: 1, 4, 256>}, {transform_indices = @transform_1, window_bounds = array<i64: 1, 4, 256>}, {transform_indices = @transform_2, window_bounds = array<i64: 1, 4, 256>}, {pipeline_mode = #tpu.pipeline_mode<synchronous>, transform_indices = @transform_3, window_bounds = array<i64: 1, 256>}, {pipeline_mode = #tpu.pipeline_mode<synchronous>, transform_indices = @transform_4, window_bounds = array<i64: 1, 256>}, {transform_indices = @transform_5, window_bounds = array<i64: 1, 4, 256>}]} {
    %c0 = arith.constant 0 : index
    %c0_0 = arith.constant 0 : index
    %c0_1 = arith.constant 0 : index
    %0 = vector.load %arg1[%c0, %c0_0, %c0_1] : memref<1x4x256xf32, #tpu.memory_space<vmem>>, vector<1x4x256xf32>
    %c0_2 = arith.constant 0 : index
    %c0_3 = arith.constant 0 : index
    %c0_4 = arith.constant 0 : index
    %1 = vector.load %arg2[%c0_2, %c0_3, %c0_4] : memref<1x4x256xf32, #tpu.memory_space<vmem>>, vector<1x4x256xf32>
    %c0_5 = arith.constant 0 : index
    %c0_6 = arith.constant 0 : index
    %c0_7 = arith.constant 0 : index
    %2 = vector.load %arg3[%c0_5, %c0_6, %c0_7] : memref<1x4x256xf32, #tpu.memory_space<vmem>>, vector<1x4x256xf32>
    %cst = arith.constant 2.500000e-01 : f32
    %3 = vector.broadcast %cst : f32 to vector<1x4x256xf32>
    %4 = arith.mulf %0, %3 : vector<1x4x256xf32>
    %5 = vector.extract_strided_slice %4 {offsets = [0, 0, 0], sizes = [1, 1, 256], strides = [1, 1, 1]} : vector<1x4x256xf32> to vector<1x1x256xf32>
    %6 = vector.shape_cast %5 : vector<1x1x256xf32> to vector<1x256xf32>
    %7 = vector.shape_cast %6 : vector<1x256xf32> to vector<1x256x1xf32>
    %8 = vector.extract_strided_slice %1 {offsets = [0, 0, 0], sizes = [1, 1, 256], strides = [1, 1, 1]} : vector<1x4x256xf32> to vector<1x1x256xf32>
    %9 = vector.shape_cast %8 : vector<1x1x256xf32> to vector<1x256xf32>
    %10 = vector.shape_cast %9 : vector<1x256xf32> to vector<1x1x256xf32>
    %11 = vector.broadcast %7 : vector<1x256x1xf32> to vector<1x256x256xf32>
    %12 = vector.broadcast %10 : vector<1x1x256xf32> to vector<1x256x256xf32>
    %13 = arith.mulf %11, %12 : vector<1x256x256xf32>
    %14 = vector.extract_strided_slice %4 {offsets = [0, 1, 0], sizes = [1, 1, 256], strides = [1, 1, 1]} : vector<1x4x256xf32> to vector<1x1x256xf32>
    %15 = vector.shape_cast %14 : vector<1x1x256xf32> to vector<1x256xf32>
    %16 = vector.shape_cast %15 : vector<1x256xf32> to vector<1x256x1xf32>
    %17 = vector.extract_strided_slice %1 {offsets = [0, 1, 0], sizes = [1, 1, 256], strides = [1, 1, 1]} : vector<1x4x256xf32> to vector<1x1x256xf32>
    %18 = vector.shape_cast %17 : vector<1x1x256xf32> to vector<1x256xf32>
    %19 = vector.shape_cast %18 : vector<1x256xf32> to vector<1x1x256xf32>
    %20 = vector.broadcast %16 : vector<1x256x1xf32> to vector<1x256x256xf32>
    %21 = vector.broadcast %19 : vector<1x1x256xf32> to vector<1x256x256xf32>
    %22 = arith.mulf %20, %21 : vector<1x256x256xf32>
    %23 = arith.addf %13, %22 : vector<1x256x256xf32>
    %24 = vector.extract_strided_slice %4 {offsets = [0, 2, 0], sizes = [1, 1, 256], strides = [1, 1, 1]} : vector<1x4x256xf32> to vector<1x1x256xf32>
    %25 = vector.shape_cast %24 : vector<1x1x256xf32> to vector<1x256xf32>
    %26 = vector.shape_cast %25 : vector<1x256xf32> to vector<1x256x1xf32>
    %27 = vector.extract_strided_slice %1 {offsets = [0, 2, 0], sizes = [1, 1, 256], strides = [1, 1, 1]} : vector<1x4x256xf32> to vector<1x1x256xf32>
    %28 = vector.shape_cast %27 : vector<1x1x256xf32> to vector<1x256xf32>
    %29 = vector.shape_cast %28 : vector<1x256xf32> to vector<1x1x256xf32>
    %30 = vector.broadcast %26 : vector<1x256x1xf32> to vector<1x256x256xf32>
    %31 = vector.broadcast %29 : vector<1x1x256xf32> to vector<1x256x256xf32>
    %32 = arith.mulf %30, %31 : vector<1x256x256xf32>
    %33 = arith.addf %23, %32 : vector<1x256x256xf32>
    %34 = vector.extract_strided_slice %4 {offsets = [0, 3, 0], sizes = [1, 1, 256], strides = [1, 1, 1]} : vector<1x4x256xf32> to vector<1x1x256xf32>
    %35 = vector.shape_cast %34 : vector<1x1x256xf32> to vector<1x256xf32>
    %36 = vector.shape_cast %35 : vector<1x256xf32> to vector<1x256x1xf32>
    %37 = vector.extract_strided_slice %1 {offsets = [0, 3, 0], sizes = [1, 1, 256], strides = [1, 1, 1]} : vector<1x4x256xf32> to vector<1x1x256xf32>
    %38 = vector.shape_cast %37 : vector<1x1x256xf32> to vector<1x256xf32>
    %39 = vector.shape_cast %38 : vector<1x256xf32> to vector<1x1x256xf32>
    %40 = vector.broadcast %36 : vector<1x256x1xf32> to vector<1x256x256xf32>
    %41 = vector.broadcast %39 : vector<1x1x256xf32> to vector<1x256x256xf32>
    %42 = arith.mulf %40, %41 : vector<1x256x256xf32>
    %43 = arith.addf %33, %42 : vector<1x256x256xf32>
    %c0_8 = arith.constant 0 : index
    %c0_9 = arith.constant 0 : index
    %44 = vector.load %arg4[%c0_8, %c0_9] : memref<1x256xi32, #tpu.memory_space<vmem>>, vector<1x256xi32>
    %c0_10 = arith.constant 0 : index
    %c0_11 = arith.constant 0 : index
    %45 = vector.load %arg5[%c0_10, %c0_11] : memref<1x256xi32, #tpu.memory_space<vmem>>, vector<1x256xi32>
    %46 = vector.shape_cast %44 : vector<1x256xi32> to vector<1x256x1xi32>
    %47 = vector.shape_cast %44 : vector<1x256xi32> to vector<1x1x256xi32>
    %48 = vector.broadcast %46 : vector<1x256x1xi32> to vector<1x256x256xi32>
    %49 = vector.broadcast %47 : vector<1x1x256xi32> to vector<1x256x256xi32>
    %50 = arith.cmpi eq, %48, %49 : vector<1x256x256xi32>
    %51 = vector.shape_cast %45 : vector<1x256xi32> to vector<1x256x1xi32>
    %52 = vector.shape_cast %45 : vector<1x256xi32> to vector<1x1x256xi32>
    %53 = vector.broadcast %51 : vector<1x256x1xi32> to vector<1x256x256xi32>
    %54 = vector.broadcast %52 : vector<1x1x256xi32> to vector<1x256x256xi32>
    %55 = arith.cmpi eq, %53, %54 : vector<1x256x256xi32>
    %cst_12 = arith.constant -1.000000e+30 : f32
    %56 = vector.broadcast %cst_12 : f32 to vector<1x256x256xf32>
    %57 = arith.select %50, %43, %56 : vector<1x256x256xi1>, vector<1x256x256xf32>
    %cst_13 = arith.constant dense<0xFF800000> : vector<1x256xf32>
    %58 = vector.multi_reduction <maximumf>, %57, %cst_13 [2] : vector<1x256x256xf32> to vector<1x256xf32>
    %59 = vector.shape_cast %58 : vector<1x256xf32> to vector<1x256x1xf32>
    %60 = vector.broadcast %59 : vector<1x256x1xf32> to vector<1x256x256xf32>
    %61 = arith.subf %57, %60 : vector<1x256x256xf32>
    %62 = math.exp %61 : vector<1x256x256xf32>
    %cst_14 = arith.constant dense<0.000000e+00> : vector<1x256xf32>
    %63 = vector.multi_reduction <add>, %62, %cst_14 [2] : vector<1x256x256xf32> to vector<1x256xf32>
    %64 = vector.shape_cast %63 : vector<1x256xf32> to vector<1x256x1xf32>
    %65 = tpu.reciprocal %64 : vector<1x256x1xf32> -> vector<1x256x1xf32>
    %66 = vector.broadcast %65 : vector<1x256x1xf32> to vector<1x256x256xf32>
    %67 = arith.mulf %62, %66 : vector<1x256x256xf32>
    "tpu.trace_start"() <{level = 10 : i32, message = "ncg,npg->ncp"}> : () -> ()
    %cst_15 = arith.constant dense<0.000000e+00> : vector<1x4x256xf32>
    %68 = tpu.matmul %2, %67, %cst_15 {dimension_numbers = #tpu.dot_dimension_numbers<[2], [2], [1], [1], [0, 0, 0, 1, 1, 1], [0], [0]>} : vector<1x4x256xf32>, vector<1x256x256xf32>, vector<1x4x256xf32> -> vector<1x4x256xf32>
    %cst_16 = arith.constant -1.000000e+30 : f32
    "tpu.trace_stop"() : () -> ()
    %69 = vector.broadcast %cst_16 : f32 to vector<1x256x256xf32>
    %70 = arith.select %55, %43, %69 : vector<1x256x256xi1>, vector<1x256x256xf32>
    %cst_17 = arith.constant dense<0xFF800000> : vector<1x256xf32>
    %71 = vector.multi_reduction <maximumf>, %70, %cst_17 [2] : vector<1x256x256xf32> to vector<1x256xf32>
    %72 = vector.shape_cast %71 : vector<1x256xf32> to vector<1x256x1xf32>
    %73 = vector.broadcast %72 : vector<1x256x1xf32> to vector<1x256x256xf32>
    %74 = arith.subf %70, %73 : vector<1x256x256xf32>
    %75 = math.exp %74 : vector<1x256x256xf32>
    %cst_18 = arith.constant dense<0.000000e+00> : vector<1x256xf32>
    %76 = vector.multi_reduction <add>, %75, %cst_18 [2] : vector<1x256x256xf32> to vector<1x256xf32>
    %77 = vector.shape_cast %76 : vector<1x256xf32> to vector<1x256x1xf32>
    %78 = tpu.reciprocal %77 : vector<1x256x1xf32> -> vector<1x256x1xf32>
    %79 = vector.broadcast %78 : vector<1x256x1xf32> to vector<1x256x256xf32>
    %80 = arith.mulf %75, %79 : vector<1x256x256xf32>
    "tpu.trace_start"() <{level = 10 : i32, message = "ncg,npg->ncp"}> : () -> ()
    %cst_19 = arith.constant dense<0.000000e+00> : vector<1x4x256xf32>
    %81 = tpu.matmul %2, %80, %cst_19 {dimension_numbers = #tpu.dot_dimension_numbers<[2], [2], [1], [1], [0, 0, 0, 1, 1, 1], [0], [0]>} : vector<1x4x256xf32>, vector<1x256x256xf32>, vector<1x4x256xf32> -> vector<1x4x256xf32>
    "tpu.trace_stop"() : () -> ()
    %82 = arith.addf %68, %81 : vector<1x4x256xf32>
    %c0_20 = arith.constant 0 : index
    %c0_21 = arith.constant 0 : index
    %c0_22 = arith.constant 0 : index
    %83 = vector.load %arg6[%c0_20, %c0_21, %c0_22] : memref<1x4x256xf32, #tpu.memory_space<vmem>>, vector<1x4x256xf32>
    tpu.vector_store %arg6[%c0_20, %c0_21, %c0_22], %82 {strides = array<i32>} : memref<1x4x256xf32, #tpu.memory_space<vmem>>, vector<1x4x256xf32>,
    return
  }
  func.func @transform_0(%arg0: i32) -> (i32, i32, i32) {
    %c0_i32 = arith.constant 0 : i32
    %c0_i32_0 = arith.constant 0 : i32
    %c0_i32_1 = arith.constant 0 : i32
    return %arg0, %c0_i32, %c0_i32_0 : i32, i32, i32
  }
  func.func @transform_1(%arg0: i32) -> (i32, i32, i32) {
    %c0_i32 = arith.constant 0 : i32
    %c0_i32_0 = arith.constant 0 : i32
    %c0_i32_1 = arith.constant 0 : i32
    return %arg0, %c0_i32, %c0_i32_0 : i32, i32, i32
  }
  func.func @transform_2(%arg0: i32) -> (i32, i32, i32) {
    %c0_i32 = arith.constant 0 : i32
    %c0_i32_0 = arith.constant 0 : i32
    %c0_i32_1 = arith.constant 0 : i32
    return %arg0, %c0_i32, %c0_i32_0 : i32, i32, i32
  }
  func.func @transform_3(%arg0: i32) -> (i32, i32) {
    %c0_i32 = arith.constant 0 : i32
    %c0_i32_0 = arith.constant 0 : i32
    %c0_i32_1 = arith.constant 0 : i32
    return %c0_i32, %c0_i32_0 : i32, i32
  }
  func.func @transform_4(%arg0: i32) -> (i32, i32) {
    %c0_i32 = arith.constant 0 : i32
    %c0_i32_0 = arith.constant 0 : i32
    %c0_i32_1 = arith.constant 0 : i32
    return %c0_i32, %c0_i32_0 : i32, i32
  }
  func.func @transform_5(%arg0: i32) -> (i32, i32, i32) {
    %c0_i32 = arith.constant 0 : i32
    %c0_i32_0 = arith.constant 0 : i32
    %c0_i32_1 = arith.constant 0 : i32
    return %arg0, %c0_i32, %c0_i32_0 : i32, i32, i32
  }
}

</mosaic_0001>

<llo_original>
// kernel: channel_wise_row_column_attention.1
$region0: #{channel_wise_row_column_attention.1}
  #allocation0 [shape = 'u32[]', space=smem, size = 0x4, offset = 0x4, fixed_abs, tag = 'smem constant byte address 0x4 - core index']
  #allocation1 [shape = 'u32[144,128]{1,0:T(1,128)}', space=vmem, size = 0x12000, scoped, tag = 'internal scratch']
  %s0 = inlined_call_operand.vmem [shape: f32[2,4,256], index: 0, kind: input, shape index: {}]
  %s1 = inlined_call_operand.vmem [shape: f32[2,4,256], index: 1, kind: input, shape index: {}]
  %s2 = inlined_call_operand.vmem [shape: f32[2,4,256], index: 2, kind: input, shape index: {}]
  %s3 = inlined_call_operand.vmem [shape: s32[1,256], index: 3, kind: input, shape index: {}]
  %s4 = inlined_call_operand.vmem [shape: s32[1,256], index: 4, kind: input, shape index: {}]
  %s5 = inlined_call_operand.vmem [shape: f32[2,4,256], index: 5, kind: output, shape index: {}]
  %s6 = sld [smem:[#allocation0]]
  $region53: #{channel_wise_row_column_attention.1} parent=0
    _
  %s8 = ssub.s32 1, %s6
  %s9 = scalar_select 0, %s8, %s6
  loop: start=0, step=1, limit=4
  $region2: #{channel_wise_row_column_attention.1} parent=0 // loop_pre_header
    _
  $region3: #{channel_wise_row_column_attention.1} parent=0 // loop_header
    %s11 = sphi 0, %s15
    %p12 = scmp.ge.s32.totalorder %s11, 4
    %s21 = sphi 0, %s23
    %s24 = sphi 0, %s21
    %s25 = sphi 0, %s24
    %s41 = sphi 0, %s25
    %s47 = sphi 0, %s49
    %s50 = sphi 0, %s47
    %s51 = sphi 0, %s50
    %s67 = sphi 0, %s51
    %s73 = sphi 0, %s75
    %s76 = sphi 0, %s73
    %s77 = sphi 0, %s76
    %s93 = sphi 0, %s77
    %s97 = sphi 0, %s97
    %s99 = sphi 0, %s97
    %s100 = sphi 0, %s99
    %s114 = sphi 0, %s100
    %s118 = sphi 0, %s118
    %s120 = sphi 0, %s118
    %s121 = sphi 0, %s120
    %s135 = sphi 0, %s121
    %s141 = sphi 0, %s143
    %s144 = sphi 0, %s141
    %s145 = sphi 0, %s144
    %s161 = sphi 0, %s145
  $region4: #{channel_wise_row_column_attention.1} parent=0 // loop_header_branch
    %14 = sbr.rel (%p12) target = $region8
  $region5: #{channel_wise_row_column_attention.1} parent=0 // loop_body
    %s16 = ssub.s32 %s11, 1
    %s17 = ssub.s32 %s11, 2
    %s18 = sadd.s32 %s11, 1
    %s19 = ssub.s32 %s11, %s18
    %p20 = scmp.eq.s32.totalorder %s19, 0
    %s22 = sadd.s32 %s21, 1
    %s23 = scalar_select %p20, %s21, %s22
    %p26 = pneg %p20
    %p27 = scmp.eq.s32.totalorder %s11, 1
    %p28 = por %p26, %p27
    %p29 = scmp.ne.s32.totalorder %s21, %s24
    %p30 = scmp.eq.s32.totalorder %s11, 0
    %p31 = por %p29, %p30
    %p32 = scmp.ne.s32.totalorder %s21, %s24
    %p33 = scmp.eq.s32.totalorder %s16, 1
    %p34 = por %p32, %p33
    %p35 = scmp.ne.s32.totalorder %s24, %s25
    %p36 = scmp.eq.s32.totalorder %s16, 0
    %p37 = por %p35, %p36
    %p38 = scmp.ne.s32.totalorder %s24, %s25
    %p39 = scmp.eq.s32.totalorder %s17, 1
    %p40 = por %p38, %p39
    %p42 = scmp.ne.s32.totalorder %s25, %s41
    %p43 = scmp.eq.s32.totalorder %s17, 0
    %p44 = por %p42, %p43
    %s45 = ssub.s32 %s11, %s18
    %p46 = scmp.eq.s32.totalorder %s45, 0
    %s48 = sadd.s32 %s47, 1
    %s49 = scalar_select %p46, %s47, %s48
    %p52 = pneg %p46
    %p53 = scmp.eq.s32.totalorder %s11, 1
    %p54 = por %p52, %p53
    %p55 = scmp.ne.s32.totalorder %s47, %s50
    %p56 = scmp.eq.s32.totalorder %s11, 0
    %p57 = por %p55, %p56
    %p58 = scmp.ne.s32.totalorder %s47, %s50
    %p59 = scmp.eq.s32.totalorder %s16, 1
    %p60 = por %p58, %p59
    %p61 = scmp.ne.s32.totalorder %s50, %s51
    %p62 = scmp.eq.s32.totalorder %s16, 0
    %p63 = por %p61, %p62
    %p64 = scmp.ne.s32.totalorder %s50, %s51
    %p65 = scmp.eq.s32.totalorder %s17, 1
    %p66 = por %p64, %p65
    %p68 = scmp.ne.s32.totalorder %s51, %s67
    %p69 = scmp.eq.s32.totalorder %s17, 0
    %p70 = por %p68, %p69
    %s71 = ssub.s32 %s11, %s18
    %p72 = scmp.eq.s32.totalorder %s71, 0
    %s74 = sadd.s32 %s73, 1
    %s75 = scalar_select %p72, %s73, %s74
    %p78 = pneg %p72
    %p79 = scmp.eq.s32.totalorder %s11, 1
    %p80 = por %p78, %p79
    %p81 = scmp.ne.s32.totalorder %s73, %s76
    %p82 = scmp.eq.s32.totalorder %s11, 0
    %p83 = por %p81, %p82
    %p84 = scmp.ne.s32.totalorder %s73, %s76
    %p85 = scmp.eq.s32.totalorder %s16, 1
    %p86 = por %p84, %p85
    %p87 = scmp.ne.s32.totalorder %s76, %s77
    %p88 = scmp.eq.s32.totalorder %s16, 0
    %p89 = por %p87, %p88
    %p90 = scmp.ne.s32.totalorder %s76, %s77
    %p91 = scmp.eq.s32.totalorder %s17, 1
    %p92 = por %p90, %p91
    %p94 = scmp.ne.s32.totalorder %s77, %s93
    %p95 = scmp.eq.s32.totalorder %s17, 0
    %p96 = por %p94, %p95
    %s98 = sadd.s32 %s97, 1
    %p101 = scmp.eq.s32.totalorder %s11, 1
    %p102 = scmp.ne.s32.totalorder %s97, %s99
    %p103 = scmp.eq.s32.totalorder %s11, 0
    %p104 = por %p102, %p103
    %p105 = scmp.ne.s32.totalorder %s97, %s99
    %p106 = scmp.eq.s32.totalorder %s16, 1
    %p107 = por %p105, %p106
    %p108 = scmp.ne.s32.totalorder %s99, %s100
    %p109 = scmp.eq.s32.totalorder %s16, 0
    %p110 = por %p108, %p109
    %p111 = scmp.ne.s32.totalorder %s99, %s100
    %p112 = scmp.eq.s32.totalorder %s17, 1
    %p113 = por %p111, %p112
    %p115 = scmp.ne.s32.totalorder %s100, %s114
    %p116 = scmp.eq.s32.totalorder %s17, 0
    %p117 = por %p115, %p116
    %s119 = sadd.s32 %s118, 1
    %p122 = scmp.eq.s32.totalorder %s11, 1
    %p123 = scmp.ne.s32.totalorder %s118, %s120
    %p124 = scmp.eq.s32.totalorder %s11, 0
    %p125 = por %p123, %p124
    %p126 = scmp.ne.s32.totalorder %s118, %s120
    %p127 = scmp.eq.s32.totalorder %s16, 1
    %p128 = por %p126, %p127
    %p129 = scmp.ne.s32.totalorder %s120, %s121
    %p130 = scmp.eq.s32.totalorder %s16, 0
    %p131 = por %p129, %p130
    %p132 = scmp.ne.s32.totalorder %s120, %s121
    %p133 = scmp.eq.s32.totalorder %s17, 1
    %p134 = por %p132, %p133
    %p136 = scmp.ne.s32.totalorder %s121, %s135
    %p137 = scmp.eq.s32.totalorder %s17, 0
    %p138 = por %p136, %p137
    %s139 = ssub.s32 %s11, %s18
    %p140 = scmp.eq.s32.totalorder %s139, 0
    %s142 = sadd.s32 %s141, 1
    %s143 = scalar_select %p140, %s141, %s142
    %p146 = pneg %p140
    %p147 = scmp.eq.s32.totalorder %s11, 1
    %p148 = por %p146, %p147
    %p149 = scmp.ne.s32.totalorder %s141, %s144
    %p150 = scmp.eq.s32.totalorder %s11, 0
    %p151 = por %p149, %p150
    %p152 = scmp.ne.s32.totalorder %s141, %s144
    %p153 = scmp.eq.s32.totalorder %s16, 1
    %p154 = por %p152, %p153
    %p155 = scmp.ne.s32.totalorder %s144, %s145
    %p156 = scmp.eq.s32.totalorder %s16, 0
    %p157 = por %p155, %p156
    %p158 = scmp.ne.s32.totalorder %s144, %s145
    %p159 = scmp.eq.s32.totalorder %s17, 1
    %p160 = por %p158, %p159
    %p162 = scmp.ne.s32.totalorder %s145, %s161
    %p163 = scmp.eq.s32.totalorder %s17, 0
    %p164 = por %p162, %p163
    %p165 = scmp.le.s32.totalorder 1, %s11
    %p166 = scmp.lt.s32.totalorder %s11, 3
    %p167 = pnand %p165, %p166
    %p168 = pneg %p167
    // Predicated region
    $region9: #{channel_wise_row_column_attention.1} parent=5 // pred_check
      _
    $region10: #{channel_wise_row_column_attention.1} parent=5 // pred_check_branch
      %170 = sbr.rel (%p167) target = $region12
    $region11: #{channel_wise_row_column_attention.1} parent=5 // pred_region
      %s171 = ssub.s32 %s11, 1
      // Predicated region
      $region13: #{channel_wise_row_column_attention.1} parent=11 // pred_check
        %p172 = pneg %p110
      $region14: #{channel_wise_row_column_attention.1} parent=11 // pred_check_branch
        %174 = sbr.rel (%p172) target = $region16
      $region15: #{channel_wise_row_column_attention.1} parent=11 // pred_region
        _
      $region16: #{channel_wise_row_column_attention.1} parent=11 // pred_fallthru
        _
      // Predicated region
      $region17: #{channel_wise_row_column_attention.1} parent=11 // pred_check
        %p175 = pneg %p131
      $region18: #{channel_wise_row_column_attention.1} parent=11 // pred_check_branch
        %177 = sbr.rel (%p175) target = $region20
      $region19: #{channel_wise_row_column_attention.1} parent=11 // pred_region
        _
      $region20: #{channel_wise_row_column_attention.1} parent=11 // pred_fallthru
        _
    $region12: #{channel_wise_row_column_attention.1} parent=5 // pred_fallthru
      _
    %p178 = scmp.lt.s32.totalorder %s11, 2
    // Predicated region
    $region21: #{channel_wise_row_column_attention.1} parent=5 // pred_check
      %p179 = pneg %p178
    $region22: #{channel_wise_row_column_attention.1} parent=5 // pred_check_branch
      %181 = sbr.rel (%p179) target = $region24
    $region23: #{channel_wise_row_column_attention.1} parent=5 // pred_region
      // Predicated region
      $region25: #{channel_wise_row_column_attention.1} parent=23 // pred_check
        %p182 = pneg %p31
      $region26: #{channel_wise_row_column_attention.1} parent=23 // pred_check_branch
        %184 = sbr.rel (%p182) target = $region28
      $region27: #{channel_wise_row_column_attention.1} parent=23 // pred_region
        %p185 = scmp.lt.s32.totalorder %s11, 1
        %s186 = scalar_select %p185, %s11, 1
        %s187 = smul.addr %s186, 2
        %s188 = smul.addr %s187, 4
        %s189 = scalar_lea.vmem %s0, %s188
      $region28: #{channel_wise_row_column_attention.1} parent=23 // pred_fallthru
        _
      // Predicated region
      $region29: #{channel_wise_row_column_attention.1} parent=23 // pred_check
        %p190 = pneg %p57
      $region30: #{channel_wise_row_column_attention.1} parent=23 // pred_check_branch
        %192 = sbr.rel (%p190) target = $region32
      $region31: #{channel_wise_row_column_attention.1} parent=23 // pred_region
        %p193 = scmp.lt.s32.totalorder %s11, 1
        %s194 = scalar_select %p193, %s11, 1
        %s195 = smul.addr %s194, 2
        %s196 = smul.addr %s195, 4
        %s197 = scalar_lea.vmem %s1, %s196
      $region32: #{channel_wise_row_column_attention.1} parent=23 // pred_fallthru
        _
      // Predicated region
      $region33: #{channel_wise_row_column_attention.1} parent=23 // pred_check
        %p198 = pneg %p83
      $region34: #{channel_wise_row_column_attention.1} parent=23 // pred_check_branch
        %200 = sbr.rel (%p198) target = $region36
      $region35: #{channel_wise_row_column_attention.1} parent=23 // pred_region
        %p201 = scmp.lt.s32.totalorder %s11, 1
        %s202 = scalar_select %p201, %s11, 1
        %s203 = smul.addr %s202, 2
        %s204 = smul.addr %s203, 4
        %s205 = scalar_lea.vmem %s2, %s204
      $region36: #{channel_wise_row_column_attention.1} parent=23 // pred_fallthru
        _
    $region24: #{channel_wise_row_column_attention.1} parent=5 // pred_fallthru
      _
    %p206 = scmp.le.s32.totalorder 1, %s11
    %p207 = scmp.lt.s32.totalorder %s11, 3
    %p208 = pnand %p206, %p207
    %p209 = pneg %p208
    // Predicated region
    $region37: #{channel_wise_row_column_attention.1} parent=5 // pred_check
      _
    $region38: #{channel_wise_row_column_attention.1} parent=5 // pred_check_branch
      %211 = sbr.rel (%p208) target = $region40
    $region39: #{channel_wise_row_column_attention.1} parent=5 // pred_region
      %s212 = ssub.s32 %s11, 1
      %p213 = scmp.lt.s32.totalorder %s16, 1
      %s214 = scalar_select %p213, %s16, 1
      %s215 = smul.addr %s214, 2
      %s216 = smul.addr %s215, 4
      %s217 = scalar_lea.vmem %s0, %s216
      %p218 = pneg %p37
      %p219 = pneg %p34
      %p220 = scmp.lt.s32.totalorder %s16, 1
      %s221 = scalar_select %p220, %s16, 1
      %s222 = smul.addr %s221, 2
      %s223 = smul.addr %s222, 4
      %s224 = scalar_lea.vmem %s1, %s223
      %p225 = pneg %p63
      %p226 = pneg %p60
      %p227 = scmp.lt.s32.totalorder %s16, 1
      %s228 = scalar_select %p227, %s16, 1
      %s229 = smul.addr %s228, 2
      %s230 = smul.addr %s229, 4
      %s231 = scalar_lea.vmem %s2, %s230
      %p232 = pneg %p89
      %p233 = pneg %p86
      %p234 = pneg %p110
      %p235 = pneg %p107
      %p236 = pneg %p131
      %p237 = pneg %p128
      %p238 = pneg %p157
      %p239 = pneg %p154
      %p240 = scmp.lt.s32.totalorder %s16, 1
      %s241 = scalar_select %p240, %s16, 1
      %s242 = smul.addr %s241, 2
      %s243 = smul.addr %s242, 4
      %s244 = scalar_lea.vmem %s5, %s243
      %p245 = scmp.lt.s32.totalorder %s16, 1
      %s246 = scalar_select %p245, %s16, 1
      %s247 = smul.addr %s246, 2
      %s248 = smul.addr %s247, 4
      %s249 = scalar_lea.vmem %s0, %s248
      %p250 = scmp.lt.s32.totalorder %s16, 1
      %s251 = scalar_select %p250, %s16, 1
      %s252 = smul.addr %s251, 2
      %s253 = smul.addr %s252, 4
      %s254 = scalar_lea.vmem %s1, %s253
      %p255 = scmp.lt.s32.totalorder %s16, 1
      %s256 = scalar_select %p255, %s16, 1
      %s257 = smul.addr %s256, 2
      %s258 = smul.addr %s257, 4
      %s259 = scalar_lea.vmem %s2, %s258
      %p260 = scmp.lt.s32.totalorder %s16, 1
      %s261 = scalar_select %p260, %s16, 1
      %s262 = smul.addr %s261, 2
      %s263 = smul.addr %s262, 4
      %s264 = scalar_lea.vmem %s5, %s263
      %v265 = vld [vmem:[%s249] sm:$0xff]
      %v266 = vld [vmem:[%s254] sm:$0xff]
      %v267 = vld [vmem:[%s259] sm:$0xff]
      %v268 = vmul.f32 %v265, 0.25
      %v270 = vlaneseq
      %v271 = vshrl.u32 %v270, 7
      %v272 = vsub.s32 0, %v271
      %v273 = vrot.slane %v268, %v272
      %v274 = vlaneseq
      %v275 = vshrl.u32 %v274, 7
      %v276 = vsub.s32 4, %v275
      %v277 = vrot.slane %v268, %v276
      %v280 = vlaneseq
      %v281 = vshrl.u32 %v280, 7
      %v282 = vsub.s32 0, %v281
      %v283 = vrot.slane %v273, %v282
      %285 = vbcast.lane.b32.xlu0 %v283, 256
      %v286 = vpop.permute.xlu0 %285
      %s288 = sor.u32 256, 8
      %289 = vbcast.lane.b32.xlu0 %v283, %s288
      %v290 = vpop.permute.xlu0 %289
      %s292 = sor.u32 256, 16
      %293 = vbcast.lane.b32.xlu0 %v283, %s292
      %v294 = vpop.permute.xlu0 %293
      %s296 = sor.u32 256, 24
      %297 = vbcast.lane.b32.xlu0 %v283, %s296
      %v298 = vpop.permute.xlu0 %297
      %s300 = sor.u32 256, 32
      %301 = vbcast.lane.b32.xlu0 %v283, %s300
      %v302 = vpop.permute.xlu0 %301
      %s304 = sor.u32 256, 40
      %305 = vbcast.lane.b32.xlu0 %v283, %s304
      %v306 = vpop.permute.xlu0 %305
      %s308 = sor.u32 256, 48
      %309 = vbcast.lane.b32.xlu0 %v283, %s308
      %v310 = vpop.permute.xlu0 %309
      %s312 = sor.u32 256, 56
      %313 = vbcast.lane.b32.xlu0 %v283, %s312
      %v314 = vpop.permute.xlu0 %313
      %s316 = sor.u32 256, 64
      %317 = vbcast.lane.b32.xlu0 %v283, %s316
      %v318 = vpop.permute.xlu0 %317
      %s320 = sor.u32 256, 72
      %321 = vbcast.lane.b32.xlu0 %v283, %s320
      %v322 = vpop.permute.xlu0 %321
      %s324 = sor.u32 256, 80
      %325 = vbcast.lane.b32.xlu0 %v283, %s324
      %v326 = vpop.permute.xlu0 %325
      %s328 = sor.u32 256, 88
      %329 = vbcast.lane.b32.xlu0 %v283, %s328
      %v330 = vpop.permute.xlu0 %329
      %s332 = sor.u32 256, 96
      %333 = vbcast.lane.b32.xlu0 %v283, %s332
      %v334 = vpop.permute.xlu0 %333
      %s336 = sor.u32 256, 104
      %337 = vbcast.lane.b32.xlu0 %v283, %s336
      %v338 = vpop.permute.xlu0 %337
      %s340 = sor.u32 256, 112
      %341 = vbcast.lane.b32.xlu0 %v283, %s340
      %v342 = vpop.permute.xlu0 %341
      %s344 = sor.u32 256, 120
      %345 = vbcast.lane.b32.xlu0 %v283, %s344
      %v346 = vpop.permute.xlu0 %345
      %v347 = vlaneseq
      %v348 = vshrl.u32 %v347, 7
      %v349 = vsub.s32 0, %v348
      %v350 = vrot.slane %v277, %v349
      %352 = vbcast.lane.b32.xlu0 %v350, 256
      %v353 = vpop.permute.xlu0 %352
      %s355 = sor.u32 256, 8
      %356 = vbcast.lane.b32.xlu0 %v350, %s355
      %v357 = vpop.permute.xlu0 %356
      %s359 = sor.u32 256, 16
      %360 = vbcast.lane.b32.xlu0 %v350, %s359
      %v361 = vpop.permute.xlu0 %360
      %s363 = sor.u32 256, 24
      %364 = vbcast.lane.b32.xlu0 %v350, %s363
      %v365 = vpop.permute.xlu0 %364
      %s367 = sor.u32 256, 32
      %368 = vbcast.lane.b32.xlu0 %v350, %s367
      %v369 = vpop.permute.xlu0 %368
      %s371 = sor.u32 256, 40
      %372 = vbcast.lane.b32.xlu0 %v350, %s371
      %v373 = vpop.permute.xlu0 %372
      %s375 = sor.u32 256, 48
      %376 = vbcast.lane.b32.xlu0 %v350, %s375
      %v377 = vpop.permute.xlu0 %376
      %s379 = sor.u32 256, 56
      %380 = vbcast.lane.b32.xlu0 %v350, %s379
      %v381 = vpop.permute.xlu0 %380
      %s383 = sor.u32 256, 64
      %384 = vbcast.lane.b32.xlu0 %v350, %s383
      %v385 = vpop.permute.xlu0 %384
      %s387 = sor.u32 256, 72
      %388 = vbcast.lane.b32.xlu0 %v350, %s387
      %v389 = vpop.permute.xlu0 %388
      %s391 = sor.u32 256, 80
      %392 = vbcast.lane.b32.xlu0 %v350, %s391
      %v393 = vpop.permute.xlu0 %392
      %s395 = sor.u32 256, 88
      %396 = vbcast.lane.b32.xlu0 %v350, %s395
      %v397 = vpop.permute.xlu0 %396
      %s399 = sor.u32 256, 96
      %400 = vbcast.lane.b32.xlu0 %v350, %s399
      %v401 = vpop.permute.xlu0 %400
      %s403 = sor.u32 256, 104
      %404 = vbcast.lane.b32.xlu0 %v350, %s403
      %v405 = vpop.permute.xlu0 %404
      %s407 = sor.u32 256, 112
      %408 = vbcast.lane.b32.xlu0 %v350, %s407
      %v409 = vpop.permute.xlu0 %408
      %s411 = sor.u32 256, 120
      %412 = vbcast.lane.b32.xlu0 %v350, %s411
      %v413 = vpop.permute.xlu0 %412
      %v415 = vlaneseq
      %v416 = vshrl.u32 %v415, 7
      %v417 = vsub.s32 0, %v416
      %v418 = vrot.slane %v266, %v417
      %v419 = vlaneseq
      %v420 = vshrl.u32 %v419, 7
      %v421 = vsub.s32 4, %v420
      %v422 = vrot.slane %v266, %v421
      %v425 = vlaneseq
      %v426 = vshrl.u32 %v425, 7
      %v427 = vsub.s32 0, %v426
      %v428 = vrot.slane %v418, %v427
      %v429 = vlaneseq
      %v430 = vshrl.u32 %v429, 7
      %v431 = vsub.s32 0, %v430
      %v432 = vrot.slane %v422, %v431
      %v433 = vmul.f32 %v286, %v428
      %v434 = vmul.f32 %v286, %v432
      %v435 = vmul.f32 %v290, %v428
      %v436 = vmul.f32 %v290, %v432
      %v437 = vmul.f32 %v294, %v428
      %v438 = vmul.f32 %v294, %v432
      %v439 = vmul.f32 %v298, %v428
      %v440 = vmul.f32 %v298, %v432
      %v441 = vmul.f32 %v302, %v428
      %v442 = vmul.f32 %v302, %v432
      %v443 = vmul.f32 %v306, %v428
      %v444 = vmul.f32 %v306, %v432
      %v445 = vmul.f32 %v310, %v428
      %v446 = vmul.f32 %v310, %v432
      %v447 = vmul.f32 %v314, %v428
      %v448 = vmul.f32 %v314, %v432
      %v449 = vmul.f32 %v318, %v428
      %v450 = vmul.f32 %v318, %v432
      %v451 = vmul.f32 %v322, %v428
      %v452 = vmul.f32 %v322, %v432
      %v453 = vmul.f32 %v326, %v428
      %v454 = vmul.f32 %v326, %v432
      %v455 = vmul.f32 %v330, %v428
      %v456 = vmul.f32 %v330, %v432
      %v457 = vmul.f32 %v334, %v428
      %v458 = vmul.f32 %v334, %v432
      %v459 = vmul.f32 %v338, %v428
      %v460 = vmul.f32 %v338, %v432
      %v461 = vmul.f32 %v342, %v428
      %v462 = vmul.f32 %v342, %v432
      %v463 = vmul.f32 %v346, %v428
      %v464 = vmul.f32 %v346, %v432
      %v465 = vmul.f32 %v353, %v428
      %v466 = vmul.f32 %v353, %v432
      %v467 = vmul.f32 %v357, %v428
      %v468 = vmul.f32 %v357, %v432
      %v469 = vmul.f32 %v361, %v428
      %v470 = vmul.f32 %v361, %v432
      %v471 = vmul.f32 %v365, %v428
      %v472 = vmul.f32 %v365, %v432
      %v473 = vmul.f32 %v369, %v428
      %v474 = vmul.f32 %v369, %v432
      %v475 = vmul.f32 %v373, %v428
      %v476 = vmul.f32 %v373, %v432
      %v477 = vmul.f32 %v377, %v428
      %v478 = vmul.f32 %v377, %v432
      %v479 = vmul.f32 %v381, %v428
      %v480 = vmul.f32 %v381, %v432
      %v481 = vmul.f32 %v385, %v428
      %v482 = vmul.f32 %v385, %v432
      %v483 = vmul.f32 %v389, %v428
      %v484 = vmul.f32 %v389, %v432
      %v485 = vmul.f32 %v393, %v428
      %v486 = vmul.f32 %v393, %v432
      %v487 = vmul.f32 %v397, %v428
      %v488 = vmul.f32 %v397, %v432
      %v489 = vmul.f32 %v401, %v428
      %v490 = vmul.f32 %v401, %v432
      %v491 = vmul.f32 %v405, %v428
      %v492 = vmul.f32 %v405, %v432
      %v493 = vmul.f32 %v409, %v428
      %v494 = vmul.f32 %v409, %v432
      %v495 = vmul.f32 %v413, %v428
      %v496 = vmul.f32 %v413, %v432
      %v497 = vlaneseq
      %v498 = vshrl.u32 %v497, 7
      %v499 = vsub.s32 1, %v498
      %v500 = vrot.slane %v268, %v499
      %v501 = vlaneseq
      %v502 = vshrl.u32 %v501, 7
      %v503 = vsub.s32 5, %v502
      %v504 = vrot.slane %v268, %v503
      %v507 = vlaneseq
      %v508 = vshrl.u32 %v507, 7
      %v509 = vsub.s32 1, %v508
      %v510 = vrot.slane %v500, %v509
      %512 = vbcast.lane.b32.xlu0 %v510, 256
      %v513 = vpop.permute.xlu0 %512
      %s515 = sor.u32 256, 8
      %516 = vbcast.lane.b32.xlu0 %v510, %s515
      %v517 = vpop.permute.xlu0 %516
      %s519 = sor.u32 256, 16
      %520 = vbcast.lane.b32.xlu0 %v510, %s519
      %v521 = vpop.permute.xlu0 %520
      %s523 = sor.u32 256, 24
      %524 = vbcast.lane.b32.xlu0 %v510, %s523
      %v525 = vpop.permute.xlu0 %524
      %s527 = sor.u32 256, 32
      %528 = vbcast.lane.b32.xlu0 %v510, %s527
      %v529 = vpop.permute.xlu0 %528
      %s531 = sor.u32 256, 40
      %532 = vbcast.lane.b32.xlu0 %v510, %s531
      %v533 = vpop.permute.xlu0 %532
      %s535 = sor.u32 256, 48
      %536 = vbcast.lane.b32.xlu0 %v510, %s535
      %v537 = vpop.permute.xlu0 %536
      %s539 = sor.u32 256, 56
      %540 = vbcast.lane.b32.xlu0 %v510, %s539
      %v541 = vpop.permute.xlu0 %540
      %s543 = sor.u32 256, 64
      %544 = vbcast.lane.b32.xlu0 %v510, %s543
      %v545 = vpop.permute.xlu0 %544
      %s547 = sor.u32 256, 72
      %548 = vbcast.lane.b32.xlu0 %v510, %s547
      %v549 = vpop.permute.xlu0 %548
      %s551 = sor.u32 256, 80
      %552 = vbcast.lane.b32.xlu0 %v510, %s551
      %v553 = vpop.permute.xlu0 %552
      %s555 = sor.u32 256, 88
      %556 = vbcast.lane.b32.xlu0 %v510, %s555
      %v557 = vpop.permute.xlu0 %556
      %s559 = sor.u32 256, 96
      %560 = vbcast.lane.b32.xlu0 %v510, %s559
      %v561 = vpop.permute.xlu0 %560
      %s563 = sor.u32 256, 104
      %564 = vbcast.lane.b32.xlu0 %v510, %s563
      %v565 = vpop.permute.xlu0 %564
      %s567 = sor.u32 256, 112
      %568 = vbcast.lane.b32.xlu0 %v510, %s567
      %v569 = vpop.permute.xlu0 %568
      %s571 = sor.u32 256, 120
      %572 = vbcast.lane.b32.xlu0 %v510, %s571
      %v573 = vpop.permute.xlu0 %572
      %v574 = vlaneseq
      %v575 = vshrl.u32 %v574, 7
      %v576 = vsub.s32 1, %v575
      %v577 = vrot.slane %v504, %v576
      %579 = vbcast.lane.b32.xlu0 %v577, 256
      %v580 = vpop.permute.xlu0 %579
      %s582 = sor.u32 256, 8
      %583 = vbcast.lane.b32.xlu0 %v577, %s582
      %v584 = vpop.permute.xlu0 %583
      %s586 = sor.u32 256, 16
      %587 = vbcast.lane.b32.xlu0 %v577, %s586
      %v588 = vpop.permute.xlu0 %587
      %s590 = sor.u32 256, 24
      %591 = vbcast.lane.b32.xlu0 %v577, %s590
      %v592 = vpop.permute.xlu0 %591
      %s594 = sor.u32 256, 32
      %595 = vbcast.lane.b32.xlu0 %v577, %s594
      %v596 = vpop.permute.xlu0 %595
      %s598 = sor.u32 256, 40
      %599 = vbcast.lane.b32.xlu0 %v577, %s598
      %v600 = vpop.permute.xlu0 %599
      %s602 = sor.u32 256, 48
      %603 = vbcast.lane.b32.xlu0 %v577, %s602
      %v604 = vpop.permute.xlu0 %603
      %s606 = sor.u32 256, 56
      %607 = vbcast.lane.b32.xlu0 %v577, %s606
      %v608 = vpop.permute.xlu0 %607
      %s610 = sor.u32 256, 64
      %611 = vbcast.lane.b32.xlu0 %v577, %s610
      %v612 = vpop.permute.xlu0 %611
      %s614 = sor.u32 256, 72
      %615 = vbcast.lane.b32.xlu0 %v577, %s614
      %v616 = vpop.permute.xlu0 %615
      %s618 = sor.u32 256, 80
      %619 = vbcast.lane.b32.xlu0 %v577, %s618
      %v620 = vpop.permute.xlu0 %619
      %s622 = sor.u32 256, 88
      %623 = vbcast.lane.b32.xlu0 %v577, %s622
      %v624 = vpop.permute.xlu0 %623
      %s626 = sor.u32 256, 96
      %627 = vbcast.lane.b32.xlu0 %v577, %s626
      %v628 = vpop.permute.xlu0 %627
      %s630 = sor.u32 256, 104
      %631 = vbcast.lane.b32.xlu0 %v577, %s630
      %v632 = vpop.permute.xlu0 %631
      %s634 = sor.u32 256, 112
      %635 = vbcast.lane.b32.xlu0 %v577, %s634
      %v636 = vpop.permute.xlu0 %635
      %s638 = sor.u32 256, 120
      %639 = vbcast.lane.b32.xlu0 %v577, %s638
      %v640 = vpop.permute.xlu0 %639
      %v641 = vlaneseq
      %v642 = vshrl.u32 %v641, 7
      %v643 = vsub.s32 1, %v642
      %v644 = vrot.slane %v266, %v643
      %v645 = vlaneseq
      %v646 = vshrl.u32 %v645, 7
      %v647 = vsub.s32 5, %v646
      %v648 = vrot.slane %v266, %v647
      %v651 = vlaneseq
      %v652 = vshrl.u32 %v651, 7
      %v653 = vsub.s32 1, %v652
      %v654 = vrot.slane %v644, %v653
      %v655 = vlaneseq
      %v656 = vshrl.u32 %v655, 7
      %v657 = vsub.s32 1, %v656
      %v658 = vrot.slane %v648, %v657
      %v659 = vmul.f32 %v513, %v654
      %v660 = vmul.f32 %v513, %v658
      %v661 = vmul.f32 %v517, %v654
      %v662 = vmul.f32 %v517, %v658
      %v663 = vmul.f32 %v521, %v654
      %v664 = vmul.f32 %v521, %v658
      %v665 = vmul.f32 %v525, %v654
      %v666 = vmul.f32 %v525, %v658
      %v667 = vmul.f32 %v529, %v654
      %v668 = vmul.f32 %v529, %v658
      %v669 = vmul.f32 %v533, %v654
      %v670 = vmul.f32 %v533, %v658
      %v671 = vmul.f32 %v537, %v654
      %v672 = vmul.f32 %v537, %v658
      %v673 = vmul.f32 %v541, %v654
      %v674 = vmul.f32 %v541, %v658
      %v675 = vmul.f32 %v545, %v654
      %v676 = vmul.f32 %v545, %v658
      %v677 = vmul.f32 %v549, %v654
      %v678 = vmul.f32 %v549, %v658
      %v679 = vmul.f32 %v553, %v654
      %v680 = vmul.f32 %v553, %v658
      %v681 = vmul.f32 %v557, %v654
      %v682 = vmul.f32 %v557, %v658
      %v683 = vmul.f32 %v561, %v654
      %v684 = vmul.f32 %v561, %v658
      %v685 = vmul.f32 %v565, %v654
      %v686 = vmul.f32 %v565, %v658
      %v687 = vmul.f32 %v569, %v654
      %v688 = vmul.f32 %v569, %v658
      %v689 = vmul.f32 %v573, %v654
      %v690 = vmul.f32 %v573, %v658
      %v691 = vmul.f32 %v580, %v654
      %v692 = vmul.f32 %v580, %v658
      %v693 = vmul.f32 %v584, %v654
      %v694 = vmul.f32 %v584, %v658
      %v695 = vmul.f32 %v588, %v654
      %v696 = vmul.f32 %v588, %v658
      %v697 = vmul.f32 %v592, %v654
      %v698 = vmul.f32 %v592, %v658
      %v699 = vmul.f32 %v596, %v654
      %v700 = vmul.f32 %v596, %v658
      %v701 = vmul.f32 %v600, %v654
      %v702 = vmul.f32 %v600, %v658
      %v703 = vmul.f32 %v604, %v654
      %v704 = vmul.f32 %v604, %v658
      %v705 = vmul.f32 %v608, %v654
      %v706 = vmul.f32 %v608, %v658
      %v707 = vmul.f32 %v612, %v654
      %v708 = vmul.f32 %v612, %v658
      %v709 = vmul.f32 %v616, %v654
      %v710 = vmul.f32 %v616, %v658
      %v711 = vmul.f32 %v620, %v654
      %v712 = vmul.f32 %v620, %v658
      %v713 = vmul.f32 %v624, %v654
      %v714 = vmul.f32 %v624, %v658
      %v715 = vmul.f32 %v628, %v654
      %v716 = vmul.f32 %v628, %v658
      %v717 = vmul.f32 %v632, %v654
      %v718 = vmul.f32 %v632, %v658
      %v719 = vmul.f32 %v636, %v654
      %v720 = vmul.f32 %v636, %v658
      %v721 = vmul.f32 %v640, %v654
      %v722 = vmul.f32 %v640, %v658
      %v723 = vadd.f32 %v433, %v659
      %v724 = vadd.f32 %v434, %v660
      %v725 = vadd.f32 %v435, %v661
      %v726 = vadd.f32 %v436, %v662
      %v727 = vadd.f32 %v437, %v663
      %v728 = vadd.f32 %v438, %v664
      %v729 = vadd.f32 %v439, %v665
      %v730 = vadd.f32 %v440, %v666
      %v731 = vadd.f32 %v441, %v667
      %v732 = vadd.f32 %v442, %v668
      %v733 = vadd.f32 %v443, %v669
      %v734 = vadd.f32 %v444, %v670
      %v735 = vadd.f32 %v445, %v671
      %v736 = vadd.f32 %v446, %v672
      %v737 = vadd.f32 %v447, %v673
      %v738 = vadd.f32 %v448, %v674
      %v739 = vadd.f32 %v449, %v675
      %v740 = vadd.f32 %v450, %v676
      %v741 = vadd.f32 %v451, %v677
      %v742 = vadd.f32 %v452, %v678
      %v743 = vadd.f32 %v453, %v679
      %v744 = vadd.f32 %v454, %v680
      %v745 = vadd.f32 %v455, %v681
      %v746 = vadd.f32 %v456, %v682
      %v747 = vadd.f32 %v457, %v683
      %v748 = vadd.f32 %v458, %v684
      %v749 = vadd.f32 %v459, %v685
      %v750 = vadd.f32 %v460, %v686
      %v751 = vadd.f32 %v461, %v687
      %v752 = vadd.f32 %v462, %v688
      %v753 = vadd.f32 %v463, %v689
      %v754 = vadd.f32 %v464, %v690
      %v755 = vadd.f32 %v465, %v691
      %v756 = vadd.f32 %v466, %v692
      %v757 = vadd.f32 %v467, %v693
      %v758 = vadd.f32 %v468, %v694
      %v759 = vadd.f32 %v469, %v695
      %v760 = vadd.f32 %v470, %v696
      %v761 = vadd.f32 %v471, %v697
      %v762 = vadd.f32 %v472, %v698
      %v763 = vadd.f32 %v473, %v699
      %v764 = vadd.f32 %v474, %v700
      %v765 = vadd.f32 %v475, %v701
      %v766 = vadd.f32 %v476, %v702
      %v767 = vadd.f32 %v477, %v703
      %v768 = vadd.f32 %v478, %v704
      %v769 = vadd.f32 %v479, %v705
      %v770 = vadd.f32 %v480, %v706
      %v771 = vadd.f32 %v481, %v707
      %v772 = vadd.f32 %v482, %v708
      %v773 = vadd.f32 %v483, %v709
      %v774 = vadd.f32 %v484, %v710
      %v775 = vadd.f32 %v485, %v711
      %v776 = vadd.f32 %v486, %v712
      %v777 = vadd.f32 %v487, %v713
      %v778 = vadd.f32 %v488, %v714
      %v779 = vadd.f32 %v489, %v715
      %v780 = vadd.f32 %v490, %v716
      %v781 = vadd.f32 %v491, %v717
      %v782 = vadd.f32 %v492, %v718
      %v783 = vadd.f32 %v493, %v719
      %v784 = vadd.f32 %v494, %v720
      %v785 = vadd.f32 %v495, %v721
      %v786 = vadd.f32 %v496, %v722
      %v787 = vlaneseq
      %v788 = vshrl.u32 %v787, 7
      %v789 = vsub.s32 2, %v788
      %v790 = vrot.slane %v268, %v789
      %v791 = vlaneseq
      %v792 = vshrl.u32 %v791, 7
      %v793 = vsub.s32 6, %v792
      %v794 = vrot.slane %v268, %v793
      %v797 = vlaneseq
      %v798 = vshrl.u32 %v797, 7
      %v799 = vsub.s32 2, %v798
      %v800 = vrot.slane %v790, %v799
      %802 = vbcast.lane.b32.xlu0 %v800, 256
      %v803 = vpop.permute.xlu0 %802
      %s805 = sor.u32 256, 8
      %806 = vbcast.lane.b32.xlu0 %v800, %s805
      %v807 = vpop.permute.xlu0 %806
      %s809 = sor.u32 256, 16
      %810 = vbcast.lane.b32.xlu0 %v800, %s809
      %v811 = vpop.permute.xlu0 %810
      %s813 = sor.u32 256, 24
      %814 = vbcast.lane.b32.xlu0 %v800, %s813
      %v815 = vpop.permute.xlu0 %814
      %s817 = sor.u32 256, 32
      %818 = vbcast.lane.b32.xlu0 %v800, %s817
      %v819 = vpop.permute.xlu0 %818
      %s821 = sor.u32 256, 40
      %822 = vbcast.lane.b32.xlu0 %v800, %s821
      %v823 = vpop.permute.xlu0 %822
      %s825 = sor.u32 256, 48
      %826 = vbcast.lane.b32.xlu0 %v800, %s825
      %v827 = vpop.permute.xlu0 %826
      %s829 = sor.u32 256, 56
      %830 = vbcast.lane.b32.xlu0 %v800, %s829
      %v831 = vpop.permute.xlu0 %830
      %s833 = sor.u32 256, 64
      %834 = vbcast.lane.b32.xlu0 %v800, %s833
      %v835 = vpop.permute.xlu0 %834
      %s837 = sor.u32 256, 72
      %838 = vbcast.lane.b32.xlu0 %v800, %s837
      %v839 = vpop.permute.xlu0 %838
      %s841 = sor.u32 256, 80
      %842 = vbcast.lane.b32.xlu0 %v800, %s841
      %v843 = vpop.permute.xlu0 %842
      %s845 = sor.u32 256, 88
      %846 = vbcast.lane.b32.xlu0 %v800, %s845
      %v847 = vpop.permute.xlu0 %846
      %s849 = sor.u32 256, 96
      %850 = vbcast.lane.b32.xlu0 %v800, %s849
      %v851 = vpop.permute.xlu0 %850
      %s853 = sor.u32 256, 104
      %854 = vbcast.lane.b32.xlu0 %v800, %s853
      %v855 = vpop.permute.xlu0 %854
      %s857 = sor.u32 256, 112
      %858 = vbcast.lane.b32.xlu0 %v800, %s857
      %v859 = vpop.permute.xlu0 %858
      %s861 = sor.u32 256, 120
      %862 = vbcast.lane.b32.xlu0 %v800, %s861
      %v863 = vpop.permute.xlu0 %862
      %v864 = vlaneseq
      %v865 = vshrl.u32 %v864, 7
      %v866 = vsub.s32 2, %v865
      %v867 = vrot.slane %v794, %v866
      %869 = vbcast.lane.b32.xlu0 %v867, 256
      %v870 = vpop.permute.xlu0 %869
      %s872 = sor.u32 256, 8
      %873 = vbcast.lane.b32.xlu0 %v867, %s872
      %v874 = vpop.permute.xlu0 %873
      %s876 = sor.u32 256, 16
      %877 = vbcast.lane.b32.xlu0 %v867, %s876
      %v878 = vpop.permute.xlu0 %877
      %s880 = sor.u32 256, 24
      %881 = vbcast.lane.b32.xlu0 %v867, %s880
      %v882 = vpop.permute.xlu0 %881
      %s884 = sor.u32 256, 32
      %885 = vbcast.lane.b32.xlu0 %v867, %s884
      %v886 = vpop.permute.xlu0 %885
      %s888 = sor.u32 256, 40
      %889 = vbcast.lane.b32.xlu0 %v867, %s888
      %v890 = vpop.permute.xlu0 %889
      %s892 = sor.u32 256, 48
      %893 = vbcast.lane.b32.xlu0 %v867, %s892
      %v894 = vpop.permute.xlu0 %893
      %s896 = sor.u32 256, 56
      %897 = vbcast.lane.b32.xlu0 %v867, %s896
      %v898 = vpop.permute.xlu0 %897
      %s900 = sor.u32 256, 64
      %901 = vbcast.lane.b32.xlu0 %v867, %s900
      %v902 = vpop.permute.xlu0 %901
      %s904 = sor.u32 256, 72
      %905 = vbcast.lane.b32.xlu0 %v867, %s904
      %v906 = vpop.permute.xlu0 %905
      %s908 = sor.u32 256, 80
      %909 = vbcast.lane.b32.xlu0 %v867, %s908
      %v910 = vpop.permute.xlu0 %909
      %s912 = sor.u32 256, 88
      %913 = vbcast.lane.b32.xlu0 %v867, %s912
      %v914 = vpop.permute.xlu0 %913
      %s916 = sor.u32 256, 96
      %917 = vbcast.lane.b32.xlu0 %v867, %s916
      %v918 = vpop.permute.xlu0 %917
      %s920 = sor.u32 256, 104
      %921 = vbcast.lane.b32.xlu0 %v867, %s920
      %v922 = vpop.permute.xlu0 %921
      %s924 = sor.u32 256, 112
      %925 = vbcast.lane.b32.xlu0 %v867, %s924
      %v926 = vpop.permute.xlu0 %925
      %s928 = sor.u32 256, 120
      %929 = vbcast.lane.b32.xlu0 %v867, %s928
      %v930 = vpop.permute.xlu0 %929
      %v931 = vlaneseq
      %v932 = vshrl.u32 %v931, 7
      %v933 = vsub.s32 2, %v932
      %v934 = vrot.slane %v266, %v933
      %v935 = vlaneseq
      %v936 = vshrl.u32 %v935, 7
      %v937 = vsub.s32 6, %v936
      %v938 = vrot.slane %v266, %v937
      %v941 = vlaneseq
      %v942 = vshrl.u32 %v941, 7
      %v943 = vsub.s32 2, %v942
      %v944 = vrot.slane %v934, %v943
      %v945 = vlaneseq
      %v946 = vshrl.u32 %v945, 7
      %v947 = vsub.s32 2, %v946
      %v948 = vrot.slane %v938, %v947
      %v949 = vmul.f32 %v803, %v944
      %v950 = vmul.f32 %v803, %v948
      %v951 = vmul.f32 %v807, %v944
      %v952 = vmul.f32 %v807, %v948
      %v953 = vmul.f32 %v811, %v944
      %v954 = vmul.f32 %v811, %v948
      %v955 = vmul.f32 %v815, %v944
      %v956 = vmul.f32 %v815, %v948
      %v957 = vmul.f32 %v819, %v944
      %v958 = vmul.f32 %v819, %v948
      %v959 = vmul.f32 %v823, %v944
      %v960 = vmul.f32 %v823, %v948
      %v961 = vmul.f32 %v827, %v944
      %v962 = vmul.f32 %v827, %v948
      %v963 = vmul.f32 %v831, %v944
      %v964 = vmul.f32 %v831, %v948
      %v965 = vmul.f32 %v835, %v944
      %v966 = vmul.f32 %v835, %v948
      %v967 = vmul.f32 %v839, %v944
      %v968 = vmul.f32 %v839, %v948
      %v969 = vmul.f32 %v843, %v944
      %v970 = vmul.f32 %v843, %v948
      %v971 = vmul.f32 %v847, %v944
      %v972 = vmul.f32 %v847, %v948
      %v973 = vmul.f32 %v851, %v944
      %v974 = vmul.f32 %v851, %v948
      %v975 = vmul.f32 %v855, %v944
      %v976 = vmul.f32 %v855, %v948
      %v977 = vmul.f32 %v859, %v944
      %v978 = vmul.f32 %v859, %v948
      %v979 = vmul.f32 %v863, %v944
      %v980 = vmul.f32 %v863, %v948
      %v981 = vmul.f32 %v870, %v944
      %v982 = vmul.f32 %v870, %v948
      %v983 = vmul.f32 %v874, %v944
      %v984 = vmul.f32 %v874, %v948
      %v985 = vmul.f32 %v878, %v944
      %v986 = vmul.f32 %v878, %v948
      %v987 = vmul.f32 %v882, %v944
      %v988 = vmul.f32 %v882, %v948
      %v989 = vmul.f32 %v886, %v944
      %v990 = vmul.f32 %v886, %v948
      %v991 = vmul.f32 %v890, %v944
      %v992 = vmul.f32 %v890, %v948
      %v993 = vmul.f32 %v894, %v944
      %v994 = vmul.f32 %v894, %v948
      %v995 = vmul.f32 %v898, %v944
      %v996 = vmul.f32 %v898, %v948
      %v997 = vmul.f32 %v902, %v944
      %v998 = vmul.f32 %v902, %v948
      %v999 = vmul.f32 %v906, %v944
      %v1000 = vmul.f32 %v906, %v948
      %v1001 = vmul.f32 %v910, %v944
      %v1002 = vmul.f32 %v910, %v948
      %v1003 = vmul.f32 %v914, %v944
      %v1004 = vmul.f32 %v914, %v948
      %v1005 = vmul.f32 %v918, %v944
      %v1006 = vmul.f32 %v918, %v948
      %v1007 = vmul.f32 %v922, %v944
      %v1008 = vmul.f32 %v922, %v948
      %v1009 = vmul.f32 %v926, %v944
      %v1010 = vmul.f32 %v926, %v948
      %v1011 = vmul.f32 %v930, %v944
      %v1012 = vmul.f32 %v930, %v948
      %v1013 = vadd.f32 %v723, %v949
      %v1014 = vadd.f32 %v724, %v950
      %v1015 = vadd.f32 %v725, %v951
      %v1016 = vadd.f32 %v726, %v952
      %v1017 = vadd.f32 %v727, %v953
      %v1018 = vadd.f32 %v728, %v954
      %v1019 = vadd.f32 %v729, %v955
      %v1020 = vadd.f32 %v730, %v956
      %v1021 = vadd.f32 %v731, %v957
      %v1022 = vadd.f32 %v732, %v958
      %v1023 = vadd.f32 %v733, %v959
      %v1024 = vadd.f32 %v734, %v960
      %v1025 = vadd.f32 %v735, %v961
      %v1026 = vadd.f32 %v736, %v962
      %v1027 = vadd.f32 %v737, %v963
      %v1028 = vadd.f32 %v738, %v964
      %v1029 = vadd.f32 %v739, %v965
      %v1030 = vadd.f32 %v740, %v966
      %v1031 = vadd.f32 %v741, %v967
      %v1032 = vadd.f32 %v742, %v968
      %v1033 = vadd.f32 %v743, %v969
      %v1034 = vadd.f32 %v744, %v970
      %v1035 = vadd.f32 %v745, %v971
      %v1036 = vadd.f32 %v746, %v972
      %v1037 = vadd.f32 %v747, %v973
      %v1038 = vadd.f32 %v748, %v974
      %v1039 = vadd.f32 %v749, %v975
      %v1040 = vadd.f32 %v750, %v976
      %v1041 = vadd.f32 %v751, %v977
      %v1042 = vadd.f32 %v752, %v978
      %v1043 = vadd.f32 %v753, %v979
      %v1044 = vadd.f32 %v754, %v980
      %v1045 = vadd.f32 %v755, %v981
      %v1046 = vadd.f32 %v756, %v982
      %v1047 = vadd.f32 %v757, %v983
      %v1048 = vadd.f32 %v758, %v984
      %v1049 = vadd.f32 %v759, %v985
      %v1050 = vadd.f32 %v760, %v986
      %v1051 = vadd.f32 %v761, %v987
      %v1052 = vadd.f32 %v762, %v988
      %v1053 = vadd.f32 %v763, %v989
      %v1054 = vadd.f32 %v764, %v990
      %v1055 = vadd.f32 %v765, %v991
      %v1056 = vadd.f32 %v766, %v992
      %v1057 = vadd.f32 %v767, %v993
      %v1058 = vadd.f32 %v768, %v994
      %v1059 = vadd.f32 %v769, %v995
      %v1060 = vadd.f32 %v770, %v996
      %v1061 = vadd.f32 %v771, %v997
      %v1062 = vadd.f32 %v772, %v998
      %v1063 = vadd.f32 %v773, %v999
      %v1064 = vadd.f32 %v774, %v1000
      %v1065 = vadd.f32 %v775, %v1001
      %v1066 = vadd.f32 %v776, %v1002
      %v1067 = vadd.f32 %v777, %v1003
      %v1068 = vadd.f32 %v778, %v1004
      %v1069 = vadd.f32 %v779, %v1005
      %v1070 = vadd.f32 %v780, %v1006
      %v1071 = vadd.f32 %v781, %v1007
      %v1072 = vadd.f32 %v782, %v1008
      %v1073 = vadd.f32 %v783, %v1009
      %v1074 = vadd.f32 %v784, %v1010
      %v1075 = vadd.f32 %v785, %v1011
      %v1076 = vadd.f32 %v786, %v1012
      %v1077 = vlaneseq
      %v1078 = vshrl.u32 %v1077, 7
      %v1079 = vsub.s32 3, %v1078
      %v1080 = vrot.slane %v268, %v1079
      %v1081 = vlaneseq
      %v1082 = vshrl.u32 %v1081, 7
      %v1083 = vsub.s32 7, %v1082
      %v1084 = vrot.slane %v268, %v1083
      %v1087 = vlaneseq
      %v1088 = vshrl.u32 %v1087, 7
      %v1089 = vsub.s32 3, %v1088
      %v1090 = vrot.slane %v1080, %v1089
      %1092 = vbcast.lane.b32.xlu0 %v1090, 256
      %v1093 = vpop.permute.xlu0 %1092
      %s1095 = sor.u32 256, 8
      %1096 = vbcast.lane.b32.xlu0 %v1090, %s1095
      %v1097 = vpop.permute.xlu0 %1096
      %s1099 = sor.u32 256, 16
      %1100 = vbcast.lane.b32.xlu0 %v1090, %s1099
      %v1101 = vpop.permute.xlu0 %1100
      %s1103 = sor.u32 256, 24
      %1104 = vbcast.lane.b32.xlu0 %v1090, %s1103
      %v1105 = vpop.permute.xlu0 %1104
      %s1107 = sor.u32 256, 32
      %1108 = vbcast.lane.b32.xlu0 %v1090, %s1107
      %v1109 = vpop.permute.xlu0 %1108
      %s1111 = sor.u32 256, 40
      %1112 = vbcast.lane.b32.xlu0 %v1090, %s1111
      %v1113 = vpop.permute.xlu0 %1112
      %s1115 = sor.u32 256, 48
      %1116 = vbcast.lane.b32.xlu0 %v1090, %s1115
      %v1117 = vpop.permute.xlu0 %1116
      %s1119 = sor.u32 256, 56
      %1120 = vbcast.lane.b32.xlu0 %v1090, %s1119
      %v1121 = vpop.permute.xlu0 %1120
      %s1123 = sor.u32 256, 64
      %1124 = vbcast.lane.b32.xlu0 %v1090, %s1123
      %v1125 = vpop.permute.xlu0 %1124
      %s1127 = sor.u32 256, 72
      %1128 = vbcast.lane.b32.xlu0 %v1090, %s1127
      %v1129 = vpop.permute.xlu0 %1128
      %s1131 = sor.u32 256, 80
      %1132 = vbcast.lane.b32.xlu0 %v1090, %s1131
      %v1133 = vpop.permute.xlu0 %1132
      %s1135 = sor.u32 256, 88
      %1136 = vbcast.lane.b32.xlu0 %v1090, %s1135
      %v1137 = vpop.permute.xlu0 %1136
      %s1139 = sor.u32 256, 96
      %1140 = vbcast.lane.b32.xlu0 %v1090, %s1139
      %v1141 = vpop.permute.xlu0 %1140
      %s1143 = sor.u32 256, 104
      %1144 = vbcast.lane.b32.xlu0 %v1090, %s1143
      %v1145 = vpop.permute.xlu0 %1144
      %s1147 = sor.u32 256, 112
      %1148 = vbcast.lane.b32.xlu0 %v1090, %s1147
      %v1149 = vpop.permute.xlu0 %1148
      %s1151 = sor.u32 256, 120
      %1152 = vbcast.lane.b32.xlu0 %v1090, %s1151
      %v1153 = vpop.permute.xlu0 %1152
      %v1154 = vlaneseq
      %v1155 = vshrl.u32 %v1154, 7
      %v1156 = vsub.s32 3, %v1155
      %v1157 = vrot.slane %v1084, %v1156
      %1159 = vbcast.lane.b32.xlu0 %v1157, 256
      %v1160 = vpop.permute.xlu0 %1159
      %s1162 = sor.u32 256, 8
      %1163 = vbcast.lane.b32.xlu0 %v1157, %s1162
      %v1164 = vpop.permute.xlu0 %1163
      %s1166 = sor.u32 256, 16
      %1167 = vbcast.lane.b32.xlu0 %v1157, %s1166
      %v1168 = vpop.permute.xlu0 %1167
      %s1170 = sor.u32 256, 24
      %1171 = vbcast.lane.b32.xlu0 %v1157, %s1170
      %v1172 = vpop.permute.xlu0 %1171
      %s1174 = sor.u32 256, 32
      %1175 = vbcast.lane.b32.xlu0 %v1157, %s1174
      %v1176 = vpop.permute.xlu0 %1175
      %s1178 = sor.u32 256, 40
      %1179 = vbcast.lane.b32.xlu0 %v1157, %s1178
      %v1180 = vpop.permute.xlu0 %1179
      %s1182 = sor.u32 256, 48
      %1183 = vbcast.lane.b32.xlu0 %v1157, %s1182
      %v1184 = vpop.permute.xlu0 %1183
      %s1186 = sor.u32 256, 56
      %1187 = vbcast.lane.b32.xlu0 %v1157, %s1186
      %v1188 = vpop.permute.xlu0 %1187
      %s1190 = sor.u32 256, 64
      %1191 = vbcast.lane.b32.xlu0 %v1157, %s1190
      %v1192 = vpop.permute.xlu0 %1191
      %s1194 = sor.u32 256, 72
      %1195 = vbcast.lane.b32.xlu0 %v1157, %s1194
      %v1196 = vpop.permute.xlu0 %1195
      %s1198 = sor.u32 256, 80
      %1199 = vbcast.lane.b32.xlu0 %v1157, %s1198
      %v1200 = vpop.permute.xlu0 %1199
      %s1202 = sor.u32 256, 88
      %1203 = vbcast.lane.b32.xlu0 %v1157, %s1202
      %v1204 = vpop.permute.xlu0 %1203
      %s1206 = sor.u32 256, 96
      %1207 = vbcast.lane.b32.xlu0 %v1157, %s1206
      %v1208 = vpop.permute.xlu0 %1207
      %s1210 = sor.u32 256, 104
      %1211 = vbcast.lane.b32.xlu0 %v1157, %s1210
      %v1212 = vpop.permute.xlu0 %1211
      %s1214 = sor.u32 256, 112
      %1215 = vbcast.lane.b32.xlu0 %v1157, %s1214
      %v1216 = vpop.permute.xlu0 %1215
      %s1218 = sor.u32 256, 120
      %1219 = vbcast.lane.b32.xlu0 %v1157, %s1218
      %v1220 = vpop.permute.xlu0 %1219
      %v1221 = vlaneseq
      %v1222 = vshrl.u32 %v1221, 7
      %v1223 = vsub.s32 3, %v1222
      %v1224 = vrot.slane %v266, %v1223
      %v1225 = vlaneseq
      %v1226 = vshrl.u32 %v1225, 7
      %v1227 = vsub.s32 7, %v1226
      %v1228 = vrot.slane %v266, %v1227
      %v1231 = vlaneseq
      %v1232 = vshrl.u32 %v1231, 7
      %v1233 = vsub.s32 3, %v1232
      %v1234 = vrot.slane %v1224, %v1233
      %v1235 = vlaneseq
      %v1236 = vshrl.u32 %v1235, 7
      %v1237 = vsub.s32 3, %v1236
      %v1238 = vrot.slane %v1228, %v1237
      %v1239 = vmul.f32 %v1093, %v1234
      %v1240 = vmul.f32 %v1093, %v1238
      %v1241 = vmul.f32 %v1097, %v1234
      %v1242 = vmul.f32 %v1097, %v1238
      %v1243 = vmul.f32 %v1101, %v1234
      %v1244 = vmul.f32 %v1101, %v1238
      %v1245 = vmul.f32 %v1105, %v1234
      %v1246 = vmul.f32 %v1105, %v1238
      %v1247 = vmul.f32 %v1109, %v1234
      %v1248 = vmul.f32 %v1109, %v1238
      %v1249 = vmul.f32 %v1113, %v1234
      %v1250 = vmul.f32 %v1113, %v1238
      %v1251 = vmul.f32 %v1117, %v1234
      %v1252 = vmul.f32 %v1117, %v1238
      %v1253 = vmul.f32 %v1121, %v1234
      %v1254 = vmul.f32 %v1121, %v1238
      %v1255 = vmul.f32 %v1125, %v1234
      %v1256 = vmul.f32 %v1125, %v1238
      %v1257 = vmul.f32 %v1129, %v1234
      %v1258 = vmul.f32 %v1129, %v1238
      %v1259 = vmul.f32 %v1133, %v1234
      %v1260 = vmul.f32 %v1133, %v1238
      %v1261 = vmul.f32 %v1137, %v1234
      %v1262 = vmul.f32 %v1137, %v1238
      %v1263 = vmul.f32 %v1141, %v1234
      %v1264 = vmul.f32 %v1141, %v1238
      %v1265 = vmul.f32 %v1145, %v1234
      %v1266 = vmul.f32 %v1145, %v1238
      %v1267 = vmul.f32 %v1149, %v1234
      %v1268 = vmul.f32 %v1149, %v1238
      %v1269 = vmul.f32 %v1153, %v1234
      %v1270 = vmul.f32 %v1153, %v1238
      %v1271 = vmul.f32 %v1160, %v1234
      %v1272 = vmul.f32 %v1160, %v1238
      %v1273 = vmul.f32 %v1164, %v1234
      %v1274 = vmul.f32 %v1164, %v1238
      %v1275 = vmul.f32 %v1168, %v1234
      %v1276 = vmul.f32 %v1168, %v1238
      %v1277 = vmul.f32 %v1172, %v1234
      %v1278 = vmul.f32 %v1172, %v1238
      %v1279 = vmul.f32 %v1176, %v1234
      %v1280 = vmul.f32 %v1176, %v1238
      %v1281 = vmul.f32 %v1180, %v1234
      %v1282 = vmul.f32 %v1180, %v1238
      %v1283 = vmul.f32 %v1184, %v1234
      %v1284 = vmul.f32 %v1184, %v1238
      %v1285 = vmul.f32 %v1188, %v1234
      %v1286 = vmul.f32 %v1188, %v1238
      %v1287 = vmul.f32 %v1192, %v1234
      %v1288 = vmul.f32 %v1192, %v1238
      %v1289 = vmul.f32 %v1196, %v1234
      %v1290 = vmul.f32 %v1196, %v1238
      %v1291 = vmul.f32 %v1200, %v1234
      %v1292 = vmul.f32 %v1200, %v1238
      %v1293 = vmul.f32 %v1204, %v1234
      %v1294 = vmul.f32 %v1204, %v1238
      %v1295 = vmul.f32 %v1208, %v1234
      %v1296 = vmul.f32 %v1208, %v1238
      %v1297 = vmul.f32 %v1212, %v1234
      %v1298 = vmul.f32 %v1212, %v1238
      %v1299 = vmul.f32 %v1216, %v1234
      %v1300 = vmul.f32 %v1216, %v1238
      %v1301 = vmul.f32 %v1220, %v1234
      %v1302 = vmul.f32 %v1220, %v1238
      %v1303 = vadd.f32 %v1013, %v1239
      %v1304 = vadd.f32 %v1014, %v1240
      %v1305 = vadd.f32 %v1015, %v1241
      %v1306 = vadd.f32 %v1016, %v1242
      %v1307 = vadd.f32 %v1017, %v1243
      %v1308 = vadd.f32 %v1018, %v1244
      %v1309 = vadd.f32 %v1019, %v1245
      %v1310 = vadd.f32 %v1020, %v1246
      %v1311 = vadd.f32 %v1021, %v1247
      %v1312 = vadd.f32 %v1022, %v1248
      %v1313 = vadd.f32 %v1023, %v1249
      %v1314 = vadd.f32 %v1024, %v1250
      %v1315 = vadd.f32 %v1025, %v1251
      %v1316 = vadd.f32 %v1026, %v1252
      %v1317 = vadd.f32 %v1027, %v1253
      %v1318 = vadd.f32 %v1028, %v1254
      %v1319 = vadd.f32 %v1029, %v1255
      %v1320 = vadd.f32 %v1030, %v1256
      %v1321 = vadd.f32 %v1031, %v1257
      %v1322 = vadd.f32 %v1032, %v1258
      %v1323 = vadd.f32 %v1033, %v1259
      %v1324 = vadd.f32 %v1034, %v1260
      %v1325 = vadd.f32 %v1035, %v1261
      %v1326 = vadd.f32 %v1036, %v1262
      %v1327 = vadd.f32 %v1037, %v1263
      %v1328 = vadd.f32 %v1038, %v1264
      %v1329 = vadd.f32 %v1039, %v1265
      %v1330 = vadd.f32 %v1040, %v1266
      %v1331 = vadd.f32 %v1041, %v1267
      %v1332 = vadd.f32 %v1042, %v1268
      %v1333 = vadd.f32 %v1043, %v1269
      %v1334 = vadd.f32 %v1044, %v1270
      %v1335 = vadd.f32 %v1045, %v1271
      %v1336 = vadd.f32 %v1046, %v1272
      %v1337 = vadd.f32 %v1047, %v1273
      %v1338 = vadd.f32 %v1048, %v1274
      %v1339 = vadd.f32 %v1049, %v1275
      %v1340 = vadd.f32 %v1050, %v1276
      %v1341 = vadd.f32 %v1051, %v1277
      %v1342 = vadd.f32 %v1052, %v1278
      %v1343 = vadd.f32 %v1053, %v1279
      %v1344 = vadd.f32 %v1054, %v1280
      %v1345 = vadd.f32 %v1055, %v1281
      %v1346 = vadd.f32 %v1056, %v1282
      %v1347 = vadd.f32 %v1057, %v1283
      %v1348 = vadd.f32 %v1058, %v1284
      %v1349 = vadd.f32 %v1059, %v1285
      %v1350 = vadd.f32 %v1060, %v1286
      %v1351 = vadd.f32 %v1061, %v1287
      %v1352 = vadd.f32 %v1062, %v1288
      %v1353 = vadd.f32 %v1063, %v1289
      %v1354 = vadd.f32 %v1064, %v1290
      %v1355 = vadd.f32 %v1065, %v1291
      %v1356 = vadd.f32 %v1066, %v1292
      %v1357 = vadd.f32 %v1067, %v1293
      %v1358 = vadd.f32 %v1068, %v1294
      %v1359 = vadd.f32 %v1069, %v1295
      %v1360 = vadd.f32 %v1070, %v1296
      %v1361 = vadd.f32 %v1071, %v1297
      %v1362 = vadd.f32 %v1072, %v1298
      %v1363 = vadd.f32 %v1073, %v1299
      %v1364 = vadd.f32 %v1074, %v1300
      %v1365 = vadd.f32 %v1075, %v1301
      %v1366 = vadd.f32 %v1076, %v1302
      %v1367 = vld [vmem:[%s3] sm:$0x3]
      %v1368 = vld [vmem:[%s4] sm:$0x3]
      %v1369 = vlaneseq
      %v1370 = vshrl.u32 %v1369, 7
      %v1371 = vsub.s32 0, %v1370
      %v1372 = vrot.slane %v1367, %v1371
      %v1373 = vlaneseq
      %v1374 = vshrl.u32 %v1373, 7
      %v1375 = vsub.s32 1, %v1374
      %v1376 = vrot.slane %v1367, %v1375
      %v1377 = vlaneseq
      %v1378 = vshrl.u32 %v1377, 7
      %v1379 = vsub.s32 0, %v1378
      %v1380 = vrot.slane %v1372, %v1379
      %1382 = vbcast.lane.b32.xlu0 %v1380, 256
      %v1383 = vpop.permute.xlu0 %1382
      %s1385 = sor.u32 256, 8
      %1386 = vbcast.lane.b32.xlu0 %v1380, %s1385
      %v1387 = vpop.permute.xlu0 %1386
      %s1389 = sor.u32 256, 16
      %1390 = vbcast.lane.b32.xlu0 %v1380, %s1389
      %v1391 = vpop.permute.xlu0 %1390
      %s1393 = sor.u32 256, 24
      %1394 = vbcast.lane.b32.xlu0 %v1380, %s1393
      %v1395 = vpop.permute.xlu0 %1394
      %s1397 = sor.u32 256, 32
      %1398 = vbcast.lane.b32.xlu0 %v1380, %s1397
      %v1399 = vpop.permute.xlu0 %1398
      %s1401 = sor.u32 256, 40
      %1402 = vbcast.lane.b32.xlu0 %v1380, %s1401
      %v1403 = vpop.permute.xlu0 %1402
      %s1405 = sor.u32 256, 48
      %1406 = vbcast.lane.b32.xlu0 %v1380, %s1405
      %v1407 = vpop.permute.xlu0 %1406
      %s1409 = sor.u32 256, 56
      %1410 = vbcast.lane.b32.xlu0 %v1380, %s1409
      %v1411 = vpop.permute.xlu0 %1410
      %s1413 = sor.u32 256, 64
      %1414 = vbcast.lane.b32.xlu0 %v1380, %s1413
      %v1415 = vpop.permute.xlu0 %1414
      %s1417 = sor.u32 256, 72
      %1418 = vbcast.lane.b32.xlu0 %v1380, %s1417
      %v1419 = vpop.permute.xlu0 %1418
      %s1421 = sor.u32 256, 80
      %1422 = vbcast.lane.b32.xlu0 %v1380, %s1421
      %v1423 = vpop.permute.xlu0 %1422
      %s1425 = sor.u32 256, 88
      %1426 = vbcast.lane.b32.xlu0 %v1380, %s1425
      %v1427 = vpop.permute.xlu0 %1426
      %s1429 = sor.u32 256, 96
      %1430 = vbcast.lane.b32.xlu0 %v1380, %s1429
      %v1431 = vpop.permute.xlu0 %1430
      %s1433 = sor.u32 256, 104
      %1434 = vbcast.lane.b32.xlu0 %v1380, %s1433
      %v1435 = vpop.permute.xlu0 %1434
      %s1437 = sor.u32 256, 112
      %1438 = vbcast.lane.b32.xlu0 %v1380, %s1437
      %v1439 = vpop.permute.xlu0 %1438
      %s1441 = sor.u32 256, 120
      %1442 = vbcast.lane.b32.xlu0 %v1380, %s1441
      %v1443 = vpop.permute.xlu0 %1442
      %v1444 = vlaneseq
      %v1445 = vshrl.u32 %v1444, 7
      %v1446 = vsub.s32 0, %v1445
      %v1447 = vrot.slane %v1376, %v1446
      %1449 = vbcast.lane.b32.xlu0 %v1447, 256
      %v1450 = vpop.permute.xlu0 %1449
      %s1452 = sor.u32 256, 8
      %1453 = vbcast.lane.b32.xlu0 %v1447, %s1452
      %v1454 = vpop.permute.xlu0 %1453
      %s1456 = sor.u32 256, 16
      %1457 = vbcast.lane.b32.xlu0 %v1447, %s1456
      %v1458 = vpop.permute.xlu0 %1457
      %s1460 = sor.u32 256, 24
      %1461 = vbcast.lane.b32.xlu0 %v1447, %s1460
      %v1462 = vpop.permute.xlu0 %1461
      %s1464 = sor.u32 256, 32
      %1465 = vbcast.lane.b32.xlu0 %v1447, %s1464
      %v1466 = vpop.permute.xlu0 %1465
      %s1468 = sor.u32 256, 40
      %1469 = vbcast.lane.b32.xlu0 %v1447, %s1468
      %v1470 = vpop.permute.xlu0 %1469
      %s1472 = sor.u32 256, 48
      %1473 = vbcast.lane.b32.xlu0 %v1447, %s1472
      %v1474 = vpop.permute.xlu0 %1473
      %s1476 = sor.u32 256, 56
      %1477 = vbcast.lane.b32.xlu0 %v1447, %s1476
      %v1478 = vpop.permute.xlu0 %1477
      %s1480 = sor.u32 256, 64
      %1481 = vbcast.lane.b32.xlu0 %v1447, %s1480
      %v1482 = vpop.permute.xlu0 %1481
      %s1484 = sor.u32 256, 72
      %1485 = vbcast.lane.b32.xlu0 %v1447, %s1484
      %v1486 = vpop.permute.xlu0 %1485
      %s1488 = sor.u32 256, 80
      %1489 = vbcast.lane.b32.xlu0 %v1447, %s1488
      %v1490 = vpop.permute.xlu0 %1489
      %s1492 = sor.u32 256, 88
      %1493 = vbcast.lane.b32.xlu0 %v1447, %s1492
      %v1494 = vpop.permute.xlu0 %1493
      %s1496 = sor.u32 256, 96
      %1497 = vbcast.lane.b32.xlu0 %v1447, %s1496
      %v1498 = vpop.permute.xlu0 %1497
      %s1500 = sor.u32 256, 104
      %1501 = vbcast.lane.b32.xlu0 %v1447, %s1500
      %v1502 = vpop.permute.xlu0 %1501
      %s1504 = sor.u32 256, 112
      %1505 = vbcast.lane.b32.xlu0 %v1447, %s1504
      %v1506 = vpop.permute.xlu0 %1505
      %s1508 = sor.u32 256, 120
      %1509 = vbcast.lane.b32.xlu0 %v1447, %s1508
      %v1510 = vpop.permute.xlu0 %1509
      %vm1511 = vcmp.eq.s32.totalorder %v1383, %v1372
      %vm1512 = vcmp.eq.s32.totalorder %v1383, %v1376
      %vm1513 = vcmp.eq.s32.totalorder %v1387, %v1372
      %vm1514 = vcmp.eq.s32.totalorder %v1387, %v1376
      %vm1515 = vcmp.eq.s32.totalorder %v1391, %v1372
      %vm1516 = vcmp.eq.s32.totalorder %v1391, %v1376
      %vm1517 = vcmp.eq.s32.totalorder %v1395, %v1372
      %vm1518 = vcmp.eq.s32.totalorder %v1395, %v1376
      %vm1519 = vcmp.eq.s32.totalorder %v1399, %v1372
      %vm1520 = vcmp.eq.s32.totalorder %v1399, %v1376
      %vm1521 = vcmp.eq.s32.totalorder %v1403, %v1372
      %vm1522 = vcmp.eq.s32.totalorder %v1403, %v1376
      %vm1523 = vcmp.eq.s32.totalorder %v1407, %v1372
      %vm1524 = vcmp.eq.s32.totalorder %v1407, %v1376
      %vm1525 = vcmp.eq.s32.totalorder %v1411, %v1372
      %vm1526 = vcmp.eq.s32.totalorder %v1411, %v1376
      %vm1527 = vcmp.eq.s32.totalorder %v1415, %v1372
      %vm1528 = vcmp.eq.s32.totalorder %v1415, %v1376
      %vm1529 = vcmp.eq.s32.totalorder %v1419, %v1372
      %vm1530 = vcmp.eq.s32.totalorder %v1419, %v1376
      %vm1531 = vcmp.eq.s32.totalorder %v1423, %v1372
      %vm1532 = vcmp.eq.s32.totalorder %v1423, %v1376
      %vm1533 = vcmp.eq.s32.totalorder %v1427, %v1372
      %vm1534 = vcmp.eq.s32.totalorder %v1427, %v1376
      %vm1535 = vcmp.eq.s32.totalorder %v1431, %v1372
      %vm1536 = vcmp.eq.s32.totalorder %v1431, %v1376
      %vm1537 = vcmp.eq.s32.totalorder %v1435, %v1372
      %vm1538 = vcmp.eq.s32.totalorder %v1435, %v1376
      %vm1539 = vcmp.eq.s32.totalorder %v1439, %v1372
      %vm1540 = vcmp.eq.s32.totalorder %v1439, %v1376
      %vm1541 = vcmp.eq.s32.totalorder %v1443, %v1372
      %vm1542 = vcmp.eq.s32.totalorder %v1443, %v1376
      %vm1543 = vcmp.eq.s32.totalorder %v1450, %v1372
      %vm1544 = vcmp.eq.s32.totalorder %v1450, %v1376
      %vm1545 = vcmp.eq.s32.totalorder %v1454, %v1372
      %vm1546 = vcmp.eq.s32.totalorder %v1454, %v1376
      %vm1547 = vcmp.eq.s32.totalorder %v1458, %v1372
      %vm1548 = vcmp.eq.s32.totalorder %v1458, %v1376
      %vm1549 = vcmp.eq.s32.totalorder %v1462, %v1372
      %vm1550 = vcmp.eq.s32.totalorder %v1462, %v1376
      %vm1551 = vcmp.eq.s32.totalorder %v1466, %v1372
      %vm1552 = vcmp.eq.s32.totalorder %v1466, %v1376
      %vm1553 = vcmp.eq.s32.totalorder %v1470, %v1372
      %vm1554 = vcmp.eq.s32.totalorder %v1470, %v1376
      %vm1555 = vcmp.eq.s32.totalorder %v1474, %v1372
      %vm1556 = vcmp.eq.s32.totalorder %v1474, %v1376
      %vm1557 = vcmp.eq.s32.totalorder %v1478, %v1372
      %vm1558 = vcmp.eq.s32.totalorder %v1478, %v1376
      %vm1559 = vcmp.eq.s32.totalorder %v1482, %v1372
      %vm1560 = vcmp.eq.s32.totalorder %v1482, %v1376
      %vm1561 = vcmp.eq.s32.totalorder %v1486, %v1372
      %vm1562 = vcmp.eq.s32.totalorder %v1486, %v1376
      %vm1563 = vcmp.eq.s32.totalorder %v1490, %v1372
      %vm1564 = vcmp.eq.s32.totalorder %v1490, %v1376
      %vm1565 = vcmp.eq.s32.totalorder %v1494, %v1372
      %vm1566 = vcmp.eq.s32.totalorder %v1494, %v1376
      %vm1567 = vcmp.eq.s32.totalorder %v1498, %v1372
      %vm1568 = vcmp.eq.s32.totalorder %v1498, %v1376
      %vm1569 = vcmp.eq.s32.totalorder %v1502, %v1372
      %vm1570 = vcmp.eq.s32.totalorder %v1502, %v1376
      %vm1571 = vcmp.eq.s32.totalorder %v1506, %v1372
      %vm1572 = vcmp.eq.s32.totalorder %v1506, %v1376
      %vm1573 = vcmp.eq.s32.totalorder %v1510, %v1372
      %vm1574 = vcmp.eq.s32.totalorder %v1510, %v1376
      %v1575 = vlaneseq
      %v1576 = vshrl.u32 %v1575, 7
      %v1577 = vsub.s32 0, %v1576
      %v1578 = vrot.slane %v1368, %v1577
      %v1579 = vlaneseq
      %v1580 = vshrl.u32 %v1579, 7
      %v1581 = vsub.s32 1, %v1580
      %v1582 = vrot.slane %v1368, %v1581
      %v1583 = vlaneseq
      %v1584 = vshrl.u32 %v1583, 7
      %v1585 = vsub.s32 0, %v1584
      %v1586 = vrot.slane %v1578, %v1585
      %1588 = vbcast.lane.b32.xlu0 %v1586, 256
      %v1589 = vpop.permute.xlu0 %1588
      %s1591 = sor.u32 256, 8
      %1592 = vbcast.lane.b32.xlu0 %v1586, %s1591
      %v1593 = vpop.permute.xlu0 %1592
      %s1595 = sor.u32 256, 16
      %1596 = vbcast.lane.b32.xlu0 %v1586, %s1595
      %v1597 = vpop.permute.xlu0 %1596
      %s1599 = sor.u32 256, 24
      %1600 = vbcast.lane.b32.xlu0 %v1586, %s1599
      %v1601 = vpop.permute.xlu0 %1600
      %s1603 = sor.u32 256, 32
      %1604 = vbcast.lane.b32.xlu0 %v1586, %s1603
      %v1605 = vpop.permute.xlu0 %1604
      %s1607 = sor.u32 256, 40
      %1608 = vbcast.lane.b32.xlu0 %v1586, %s1607
      %v1609 = vpop.permute.xlu0 %1608
      %s1611 = sor.u32 256, 48
      %1612 = vbcast.lane.b32.xlu0 %v1586, %s1611
      %v1613 = vpop.permute.xlu0 %1612
      %s1615 = sor.u32 256, 56
      %1616 = vbcast.lane.b32.xlu0 %v1586, %s1615
      %v1617 = vpop.permute.xlu0 %1616
      %s1619 = sor.u32 256, 64
      %1620 = vbcast.lane.b32.xlu0 %v1586, %s1619
      %v1621 = vpop.permute.xlu0 %1620
      %s1623 = sor.u32 256, 72
      %1624 = vbcast.lane.b32.xlu0 %v1586, %s1623
      %v1625 = vpop.permute.xlu0 %1624
      %s1627 = sor.u32 256, 80
      %1628 = vbcast.lane.b32.xlu0 %v1586, %s1627
      %v1629 = vpop.permute.xlu0 %1628
      %s1631 = sor.u32 256, 88
      %1632 = vbcast.lane.b32.xlu0 %v1586, %s1631
      %v1633 = vpop.permute.xlu0 %1632
      %s1635 = sor.u32 256, 96
      %1636 = vbcast.lane.b32.xlu0 %v1586, %s1635
      %v1637 = vpop.permute.xlu0 %1636
      %s1639 = sor.u32 256, 104
      %1640 = vbcast.lane.b32.xlu0 %v1586, %s1639
      %v1641 = vpop.permute.xlu0 %1640
      %s1643 = sor.u32 256, 112
      %1644 = vbcast.lane.b32.xlu0 %v1586, %s1643
      %v1645 = vpop.permute.xlu0 %1644
      %s1647 = sor.u32 256, 120
      %1648 = vbcast.lane.b32.xlu0 %v1586, %s1647
      %v1649 = vpop.permute.xlu0 %1648
      %v1650 = vlaneseq
      %v1651 = vshrl.u32 %v1650, 7
      %v1652 = vsub.s32 0, %v1651
      %v1653 = vrot.slane %v1582, %v1652
      %1655 = vbcast.lane.b32.xlu0 %v1653, 256
      %v1656 = vpop.permute.xlu0 %1655
      %s1658 = sor.u32 256, 8
      %1659 = vbcast.lane.b32.xlu0 %v1653, %s1658
      %v1660 = vpop.permute.xlu0 %1659
      %s1662 = sor.u32 256, 16
      %1663 = vbcast.lane.b32.xlu0 %v1653, %s1662
      %v1664 = vpop.permute.xlu0 %1663
      %s1666 = sor.u32 256, 24
      %1667 = vbcast.lane.b32.xlu0 %v1653, %s1666
      %v1668 = vpop.permute.xlu0 %1667
      %s1670 = sor.u32 256, 32
      %1671 = vbcast.lane.b32.xlu0 %v1653, %s1670
      %v1672 = vpop.permute.xlu0 %1671
      %s1674 = sor.u32 256, 40
      %1675 = vbcast.lane.b32.xlu0 %v1653, %s1674
      %v1676 = vpop.permute.xlu0 %1675
      %s1678 = sor.u32 256, 48
      %1679 = vbcast.lane.b32.xlu0 %v1653, %s1678
      %v1680 = vpop.permute.xlu0 %1679
      %s1682 = sor.u32 256, 56
      %1683 = vbcast.lane.b32.xlu0 %v1653, %s1682
      %v1684 = vpop.permute.xlu0 %1683
      %s1686 = sor.u32 256, 64
      %1687 = vbcast.lane.b32.xlu0 %v1653, %s1686
      %v1688 = vpop.permute.xlu0 %1687
      %s1690 = sor.u32 256, 72
      %1691 = vbcast.lane.b32.xlu0 %v1653, %s1690
      %v1692 = vpop.permute.xlu0 %1691
      %s1694 = sor.u32 256, 80
      %1695 = vbcast.lane.b32.xlu0 %v1653, %s1694
      %v1696 = vpop.permute.xlu0 %1695
      %s1698 = sor.u32 256, 88
      %1699 = vbcast.lane.b32.xlu0 %v1653, %s1698
      %v1700 = vpop.permute.xlu0 %1699
      %s1702 = sor.u32 256, 96
      %1703 = vbcast.lane.b32.xlu0 %v1653, %s1702
      %v1704 = vpop.permute.xlu0 %1703
      %s1706 = sor.u32 256, 104
      %1707 = vbcast.lane.b32.xlu0 %v1653, %s1706
      %v1708 = vpop.permute.xlu0 %1707
      %s1710 = sor.u32 256, 112
      %1711 = vbcast.lane.b32.xlu0 %v1653, %s1710
      %v1712 = vpop.permute.xlu0 %1711
      %s1714 = sor.u32 256, 120
      %1715 = vbcast.lane.b32.xlu0 %v1653, %s1714
      %v1716 = vpop.permute.xlu0 %1715
      %vm1717 = vcmp.eq.s32.totalorder %v1589, %v1578
      %vm1718 = vcmp.eq.s32.totalorder %v1589, %v1582
      %vm1719 = vcmp.eq.s32.totalorder %v1593, %v1578
      %vm1720 = vcmp.eq.s32.totalorder %v1593, %v1582
      %vm1721 = vcmp.eq.s32.totalorder %v1597, %v1578
      %vm1722 = vcmp.eq.s32.totalorder %v1597, %v1582
      %vm1723 = vcmp.eq.s32.totalorder %v1601, %v1578
      %vm1724 = vcmp.eq.s32.totalorder %v1601, %v1582
      %vm1725 = vcmp.eq.s32.totalorder %v1605, %v1578
      %vm1726 = vcmp.eq.s32.totalorder %v1605, %v1582
      %vm1727 = vcmp.eq.s32.totalorder %v1609, %v1578
      %vm1728 = vcmp.eq.s32.totalorder %v1609, %v1582
      %vm1729 = vcmp.eq.s32.totalorder %v1613, %v1578
      %vm1730 = vcmp.eq.s32.totalorder %v1613, %v1582
      %vm1731 = vcmp.eq.s32.totalorder %v1617, %v1578
      %vm1732 = vcmp.eq.s32.totalorder %v1617, %v1582
      %vm1733 = vcmp.eq.s32.totalorder %v1621, %v1578
      %vm1734 = vcmp.eq.s32.totalorder %v1621, %v1582
      %vm1735 = vcmp.eq.s32.totalorder %v1625, %v1578
      %vm1736 = vcmp.eq.s32.totalorder %v1625, %v1582
      %vm1737 = vcmp.eq.s32.totalorder %v1629, %v1578
      %vm1738 = vcmp.eq.s32.totalorder %v1629, %v1582
      %vm1739 = vcmp.eq.s32.totalorder %v1633, %v1578
      %vm1740 = vcmp.eq.s32.totalorder %v1633, %v1582
      %vm1741 = vcmp.eq.s32.totalorder %v1637, %v1578
      %vm1742 = vcmp.eq.s32.totalorder %v1637, %v1582
      %vm1743 = vcmp.eq.s32.totalorder %v1641, %v1578
      %vm1744 = vcmp.eq.s32.totalorder %v1641, %v1582
      %vm1745 = vcmp.eq.s32.totalorder %v1645, %v1578
      %vm1746 = vcmp.eq.s32.totalorder %v1645, %v1582
      %vm1747 = vcmp.eq.s32.totalorder %v1649, %v1578
      %vm1748 = vcmp.eq.s32.totalorder %v1649, %v1582
      %vm1749 = vcmp.eq.s32.totalorder %v1656, %v1578
      %vm1750 = vcmp.eq.s32.totalorder %v1656, %v1582
      %vm1751 = vcmp.eq.s32.totalorder %v1660, %v1578
      %vm1752 = vcmp.eq.s32.totalorder %v1660, %v1582
      %vm1753 = vcmp.eq.s32.totalorder %v1664, %v1578
      %vm1754 = vcmp.eq.s32.totalorder %v1664, %v1582
      %vm1755 = vcmp.eq.s32.totalorder %v1668, %v1578
      %vm1756 = vcmp.eq.s32.totalorder %v1668, %v1582
      %vm1757 = vcmp.eq.s32.totalorder %v1672, %v1578
      %vm1758 = vcmp.eq.s32.totalorder %v1672, %v1582
      %vm1759 = vcmp.eq.s32.totalorder %v1676, %v1578
      %vm1760 = vcmp.eq.s32.totalorder %v1676, %v1582
      %vm1761 = vcmp.eq.s32.totalorder %v1680, %v1578
      %vm1762 = vcmp.eq.s32.totalorder %v1680, %v1582
      %vm1763 = vcmp.eq.s32.totalorder %v1684, %v1578
      %vm1764 = vcmp.eq.s32.totalorder %v1684, %v1582
      %vm1765 = vcmp.eq.s32.totalorder %v1688, %v1578
      %vm1766 = vcmp.eq.s32.totalorder %v1688, %v1582
      %vm1767 = vcmp.eq.s32.totalorder %v1692, %v1578
      %vm1768 = vcmp.eq.s32.totalorder %v1692, %v1582
      %vm1769 = vcmp.eq.s32.totalorder %v1696, %v1578
      %vm1770 = vcmp.eq.s32.totalorder %v1696, %v1582
      %vm1771 = vcmp.eq.s32.totalorder %v1700, %v1578
      %vm1772 = vcmp.eq.s32.totalorder %v1700, %v1582
      %vm1773 = vcmp.eq.s32.totalorder %v1704, %v1578
      %vm1774 = vcmp.eq.s32.totalorder %v1704, %v1582
      %vm1775 = vcmp.eq.s32.totalorder %v1708, %v1578
      %vm1776 = vcmp.eq.s32.totalorder %v1708, %v1582
      %vm1777 = vcmp.eq.s32.totalorder %v1712, %v1578
      %vm1778 = vcmp.eq.s32.totalorder %v1712, %v1582
      %vm1779 = vcmp.eq.s32.totalorder %v1716, %v1578
      %vm1780 = vcmp.eq.s32.totalorder %v1716, %v1582
      %v1781 = vsel %vm1511, %v1303, -1e+30
      %v1782 = vsel %vm1512, %v1304, -1e+30
      %v1783 = vsel %vm1513, %v1305, -1e+30
      %v1784 = vsel %vm1514, %v1306, -1e+30
      %v1785 = vsel %vm1515, %v1307, -1e+30
      %v1786 = vsel %vm1516, %v1308, -1e+30
      %v1787 = vsel %vm1517, %v1309, -1e+30
      %v1788 = vsel %vm1518, %v1310, -1e+30
      %v1789 = vsel %vm1519, %v1311, -1e+30
      %v1790 = vsel %vm1520, %v1312, -1e+30
      %v1791 = vsel %vm1521, %v1313, -1e+30
      %v1792 = vsel %vm1522, %v1314, -1e+30
      %v1793 = vsel %vm1523, %v1315, -1e+30
      %v1794 = vsel %vm1524, %v1316, -1e+30
      %v1795 = vsel %vm1525, %v1317, -1e+30
      %v1796 = vsel %vm1526, %v1318, -1e+30
      %v1797 = vsel %vm1527, %v1319, -1e+30
      %v1798 = vsel %vm1528, %v1320, -1e+30
      %v1799 = vsel %vm1529, %v1321, -1e+30
      %v1800 = vsel %vm1530, %v1322, -1e+30
      %v1801 = vsel %vm1531, %v1323, -1e+30
      %v1802 = vsel %vm1532, %v1324, -1e+30
      %v1803 = vsel %vm1533, %v1325, -1e+30
      %v1804 = vsel %vm1534, %v1326, -1e+30
      %v1805 = vsel %vm1535, %v1327, -1e+30
      %v1806 = vsel %vm1536, %v1328, -1e+30
      %v1807 = vsel %vm1537, %v1329, -1e+30
      %v1808 = vsel %vm1538, %v1330, -1e+30
      %v1809 = vsel %vm1539, %v1331, -1e+30
      %v1810 = vsel %vm1540, %v1332, -1e+30
      %v1811 = vsel %vm1541, %v1333, -1e+30
      %v1812 = vsel %vm1542, %v1334, -1e+30
      %v1813 = vsel %vm1543, %v1335, -1e+30
      %v1814 = vsel %vm1544, %v1336, -1e+30
      %v1815 = vsel %vm1545, %v1337, -1e+30
      %v1816 = vsel %vm1546, %v1338, -1e+30
      %v1817 = vsel %vm1547, %v1339, -1e+30
      %v1818 = vsel %vm1548, %v1340, -1e+30
      %v1819 = vsel %vm1549, %v1341, -1e+30
      %v1820 = vsel %vm1550, %v1342, -1e+30
      %v1821 = vsel %vm1551, %v1343, -1e+30
      %v1822 = vsel %vm1552, %v1344, -1e+30
      %v1823 = vsel %vm1553, %v1345, -1e+30
      %v1824 = vsel %vm1554, %v1346, -1e+30
      %v1825 = vsel %vm1555, %v1347, -1e+30
      %v1826 = vsel %vm1556, %v1348, -1e+30
      %v1827 = vsel %vm1557, %v1349, -1e+30
      %v1828 = vsel %vm1558, %v1350, -1e+30
      %v1829 = vsel %vm1559, %v1351, -1e+30
      %v1830 = vsel %vm1560, %v1352, -1e+30
      %v1831 = vsel %vm1561, %v1353, -1e+30
      %v1832 = vsel %vm1562, %v1354, -1e+30
      %v1833 = vsel %vm1563, %v1355, -1e+30
      %v1834 = vsel %vm1564, %v1356, -1e+30
      %v1835 = vsel %vm1565, %v1357, -1e+30
      %v1836 = vsel %vm1566, %v1358, -1e+30
      %v1837 = vsel %vm1567, %v1359, -1e+30
      %v1838 = vsel %vm1568, %v1360, -1e+30
      %v1839 = vsel %vm1569, %v1361, -1e+30
      %v1840 = vsel %vm1570, %v1362, -1e+30
      %v1841 = vsel %vm1571, %v1363, -1e+30
      %v1842 = vsel %vm1572, %v1364, -1e+30
      %v1843 = vsel %vm1573, %v1365, -1e+30
      %v1844 = vsel %vm1574, %v1366, -1e+30
      %v1845 = vmax.f32 %v1781, %v1782
      %1846 = vmax.xlane.f32.xlu0 %v1845
      %v1847 = vpop.xlane.xlu0 %1846
      %v1848 = vmax.f32 %v1783, %v1784
      %1849 = vmax.xlane.f32.xlu0 %v1848
      %v1850 = vpop.xlane.xlu0 %1849
      %v1851 = vmax.f32 %v1785, %v1786
      %1852 = vmax.xlane.f32.xlu0 %v1851
      %v1853 = vpop.xlane.xlu0 %1852
      %v1854 = vmax.f32 %v1787, %v1788
      %1855 = vmax.xlane.f32.xlu0 %v1854
      %v1856 = vpop.xlane.xlu0 %1855
      %v1857 = vmax.f32 %v1789, %v1790
      %1858 = vmax.xlane.f32.xlu0 %v1857
      %v1859 = vpop.xlane.xlu0 %1858
      %v1860 = vmax.f32 %v1791, %v1792
      %1861 = vmax.xlane.f32.xlu0 %v1860
      %v1862 = vpop.xlane.xlu0 %1861
      %v1863 = vmax.f32 %v1793, %v1794
      %1864 = vmax.xlane.f32.xlu0 %v1863
      %v1865 = vpop.xlane.xlu0 %1864
      %v1866 = vmax.f32 %v1795, %v1796
      %1867 = vmax.xlane.f32.xlu0 %v1866
      %v1868 = vpop.xlane.xlu0 %1867
      %v1869 = vmax.f32 %v1797, %v1798
      %1870 = vmax.xlane.f32.xlu0 %v1869
      %v1871 = vpop.xlane.xlu0 %1870
      %v1872 = vmax.f32 %v1799, %v1800
      %1873 = vmax.xlane.f32.xlu0 %v1872
      %v1874 = vpop.xlane.xlu0 %1873
      %v1875 = vmax.f32 %v1801, %v1802
      %1876 = vmax.xlane.f32.xlu0 %v1875
      %v1877 = vpop.xlane.xlu0 %1876
      %v1878 = vmax.f32 %v1803, %v1804
      %1879 = vmax.xlane.f32.xlu0 %v1878
      %v1880 = vpop.xlane.xlu0 %1879
      %v1881 = vmax.f32 %v1805, %v1806
      %1882 = vmax.xlane.f32.xlu0 %v1881
      %v1883 = vpop.xlane.xlu0 %1882
      %v1884 = vmax.f32 %v1807, %v1808
      %1885 = vmax.xlane.f32.xlu0 %v1884
      %v1886 = vpop.xlane.xlu0 %1885
      %v1887 = vmax.f32 %v1809, %v1810
      %1888 = vmax.xlane.f32.xlu0 %v1887
      %v1889 = vpop.xlane.xlu0 %1888
      %v1890 = vmax.f32 %v1811, %v1812
      %1891 = vmax.xlane.f32.xlu0 %v1890
      %v1892 = vpop.xlane.xlu0 %1891
      %v1893 = vmax.f32 %v1813, %v1814
      %1894 = vmax.xlane.f32.xlu0 %v1893
      %v1895 = vpop.xlane.xlu0 %1894
      %v1896 = vmax.f32 %v1815, %v1816
      %1897 = vmax.xlane.f32.xlu0 %v1896
      %v1898 = vpop.xlane.xlu0 %1897
      %v1899 = vmax.f32 %v1817, %v1818
      %1900 = vmax.xlane.f32.xlu0 %v1899
      %v1901 = vpop.xlane.xlu0 %1900
      %v1902 = vmax.f32 %v1819, %v1820
      %1903 = vmax.xlane.f32.xlu0 %v1902
      %v1904 = vpop.xlane.xlu0 %1903
      %v1905 = vmax.f32 %v1821, %v1822
      %1906 = vmax.xlane.f32.xlu0 %v1905
      %v1907 = vpop.xlane.xlu0 %1906
      %v1908 = vmax.f32 %v1823, %v1824
      %1909 = vmax.xlane.f32.xlu0 %v1908
      %v1910 = vpop.xlane.xlu0 %1909
      %v1911 = vmax.f32 %v1825, %v1826
      %1912 = vmax.xlane.f32.xlu0 %v1911
      %v1913 = vpop.xlane.xlu0 %1912
      %v1914 = vmax.f32 %v1827, %v1828
      %1915 = vmax.xlane.f32.xlu0 %v1914
      %v1916 = vpop.xlane.xlu0 %1915
      %v1917 = vmax.f32 %v1829, %v1830
      %1918 = vmax.xlane.f32.xlu0 %v1917
      %v1919 = vpop.xlane.xlu0 %1918
      %v1920 = vmax.f32 %v1831, %v1832
      %1921 = vmax.xlane.f32.xlu0 %v1920
      %v1922 = vpop.xlane.xlu0 %1921
      %v1923 = vmax.f32 %v1833, %v1834
      %1924 = vmax.xlane.f32.xlu0 %v1923
      %v1925 = vpop.xlane.xlu0 %1924
      %v1926 = vmax.f32 %v1835, %v1836
      %1927 = vmax.xlane.f32.xlu0 %v1926
      %v1928 = vpop.xlane.xlu0 %1927
      %v1929 = vmax.f32 %v1837, %v1838
      %1930 = vmax.xlane.f32.xlu0 %v1929
      %v1931 = vpop.xlane.xlu0 %1930
      %v1932 = vmax.f32 %v1839, %v1840
      %1933 = vmax.xlane.f32.xlu0 %v1932
      %v1934 = vpop.xlane.xlu0 %1933
      %v1935 = vmax.f32 %v1841, %v1842
      %1936 = vmax.xlane.f32.xlu0 %v1935
      %v1937 = vpop.xlane.xlu0 %1936
      %v1938 = vmax.f32 %v1843, %v1844
      %1939 = vmax.xlane.f32.xlu0 %v1938
      %v1940 = vpop.xlane.xlu0 %1939
      %v1941 = vsub.f32 %v1781, %v1847
      %v1942 = vsub.f32 %v1782, %v1847
      %v1943 = vsub.f32 %v1783, %v1850
      %v1944 = vsub.f32 %v1784, %v1850
      %v1945 = vsub.f32 %v1785, %v1853
      %v1946 = vsub.f32 %v1786, %v1853
      %v1947 = vsub.f32 %v1787, %v1856
      %v1948 = vsub.f32 %v1788, %v1856
      %v1949 = vsub.f32 %v1789, %v1859
      %v1950 = vsub.f32 %v1790, %v1859
      %v1951 = vsub.f32 %v1791, %v1862
      %v1952 = vsub.f32 %v1792, %v1862
      %v1953 = vsub.f32 %v1793, %v1865
      %v1954 = vsub.f32 %v1794, %v1865
      %v1955 = vsub.f32 %v1795, %v1868
      %v1956 = vsub.f32 %v1796, %v1868
      %v1957 = vsub.f32 %v1797, %v1871
      %v1958 = vsub.f32 %v1798, %v1871
      %v1959 = vsub.f32 %v1799, %v1874
      %v1960 = vsub.f32 %v1800, %v1874
      %v1961 = vsub.f32 %v1801, %v1877
      %v1962 = vsub.f32 %v1802, %v1877
      %v1963 = vsub.f32 %v1803, %v1880
      %v1964 = vsub.f32 %v1804, %v1880
      %v1965 = vsub.f32 %v1805, %v1883
      %v1966 = vsub.f32 %v1806, %v1883
      %v1967 = vsub.f32 %v1807, %v1886
      %v1968 = vsub.f32 %v1808, %v1886
      %v1969 = vsub.f32 %v1809, %v1889
      %v1970 = vsub.f32 %v1810, %v1889
      %v1971 = vsub.f32 %v1811, %v1892
      %v1972 = vsub.f32 %v1812, %v1892
      %v1973 = vsub.f32 %v1813, %v1895
      %v1974 = vsub.f32 %v1814, %v1895
      %v1975 = vsub.f32 %v1815, %v1898
      %v1976 = vsub.f32 %v1816, %v1898
      %v1977 = vsub.f32 %v1817, %v1901
      %v1978 = vsub.f32 %v1818, %v1901
      %v1979 = vsub.f32 %v1819, %v1904
      %v1980 = vsub.f32 %v1820, %v1904
      %v1981 = vsub.f32 %v1821, %v1907
      %v1982 = vsub.f32 %v1822, %v1907
      %v1983 = vsub.f32 %v1823, %v1910
      %v1984 = vsub.f32 %v1824, %v1910
      %v1985 = vsub.f32 %v1825, %v1913
      %v1986 = vsub.f32 %v1826, %v1913
      %v1987 = vsub.f32 %v1827, %v1916
      %v1988 = vsub.f32 %v1828, %v1916
      %v1989 = vsub.f32 %v1829, %v1919
      %v1990 = vsub.f32 %v1830, %v1919
      %v1991 = vsub.f32 %v1831, %v1922
      %v1992 = vsub.f32 %v1832, %v1922
      %v1993 = vsub.f32 %v1833, %v1925
      %v1994 = vsub.f32 %v1834, %v1925
      %v1995 = vsub.f32 %v1835, %v1928
      %v1996 = vsub.f32 %v1836, %v1928
      %v1997 = vsub.f32 %v1837, %v1931
      %v1998 = vsub.f32 %v1838, %v1931
      %v1999 = vsub.f32 %v1839, %v1934
      %v2000 = vsub.f32 %v1840, %v1934
      %v2001 = vsub.f32 %v1841, %v1937
      %v2002 = vsub.f32 %v1842, %v1937
      %v2003 = vsub.f32 %v1843, %v1940
      %v2004 = vsub.f32 %v1844, %v1940
      %v2005 = vmul.f32 %v1941, 1.442695
      %v2006 = vpow.pop %v2005
      %v2007 = vmul.f32 %v1942, 1.442695
      %v2008 = vpow.pop %v2007
      %v2009 = vmul.f32 %v1943, 1.442695
      %v2010 = vpow.pop %v2009
      %v2011 = vmul.f32 %v1944, 1.442695
      %v2012 = vpow.pop %v2011
      %v2013 = vmul.f32 %v1945, 1.442695
      %v2014 = vpow.pop %v2013
      %v2015 = vmul.f32 %v1946, 1.442695
      %v2016 = vpow.pop %v2015
      %v2017 = vmul.f32 %v1947, 1.442695
      %v2018 = vpow.pop %v2017
      %v2019 = vmul.f32 %v1948, 1.442695
      %v2020 = vpow.pop %v2019
      %v2021 = vmul.f32 %v1949, 1.442695
      %v2022 = vpow.pop %v2021
      %v2023 = vmul.f32 %v1950, 1.442695
      %v2024 = vpow.pop %v2023
      %v2025 = vmul.f32 %v1951, 1.442695
      %v2026 = vpow.pop %v2025
      %v2027 = vmul.f32 %v1952, 1.442695
      %v2028 = vpow.pop %v2027
      %v2029 = vmul.f32 %v1953, 1.442695
      %v2030 = vpow.pop %v2029
      %v2031 = vmul.f32 %v1954, 1.442695
      %v2032 = vpow.pop %v2031
      %v2033 = vmul.f32 %v1955, 1.442695
      %v2034 = vpow.pop %v2033
      %v2035 = vmul.f32 %v1956, 1.442695
      %v2036 = vpow.pop %v2035
      %v2037 = vmul.f32 %v1957, 1.442695
      %v2038 = vpow.pop %v2037
      %v2039 = vmul.f32 %v1958, 1.442695
      %v2040 = vpow.pop %v2039
      %v2041 = vmul.f32 %v1959, 1.442695
      %v2042 = vpow.pop %v2041
      %v2043 = vmul.f32 %v1960, 1.442695
      %v2044 = vpow.pop %v2043
      %v2045 = vmul.f32 %v1961, 1.442695
      %v2046 = vpow.pop %v2045
      %v2047 = vmul.f32 %v1962, 1.442695
      %v2048 = vpow.pop %v2047
      %v2049 = vmul.f32 %v1963, 1.442695
      %v2050 = vpow.pop %v2049
      %v2051 = vmul.f32 %v1964, 1.442695
      %v2052 = vpow.pop %v2051
      %v2053 = vmul.f32 %v1965, 1.442695
      %v2054 = vpow.pop %v2053
      %v2055 = vmul.f32 %v1966, 1.442695
      %v2056 = vpow.pop %v2055
      %v2057 = vmul.f32 %v1967, 1.442695
      %v2058 = vpow.pop %v2057
      %v2059 = vmul.f32 %v1968, 1.442695
      %v2060 = vpow.pop %v2059
      %v2061 = vmul.f32 %v1969, 1.442695
      %v2062 = vpow.pop %v2061
      %v2063 = vmul.f32 %v1970, 1.442695
      %v2064 = vpow.pop %v2063
      %v2065 = vmul.f32 %v1971, 1.442695
      %v2066 = vpow.pop %v2065
      %v2067 = vmul.f32 %v1972, 1.442695
      %v2068 = vpow.pop %v2067
      %v2069 = vmul.f32 %v1973, 1.442695
      %v2070 = vpow.pop %v2069
      %v2071 = vmul.f32 %v1974, 1.442695
      %v2072 = vpow.pop %v2071
      %v2073 = vmul.f32 %v1975, 1.442695
      %v2074 = vpow.pop %v2073
      %v2075 = vmul.f32 %v1976, 1.442695
      %v2076 = vpow.pop %v2075
      %v2077 = vmul.f32 %v1977, 1.442695
      %v2078 = vpow.pop %v2077
      %v2079 = vmul.f32 %v1978, 1.442695
      %v2080 = vpow.pop %v2079
      %v2081 = vmul.f32 %v1979, 1.442695
      %v2082 = vpow.pop %v2081
      %v2083 = vmul.f32 %v1980, 1.442695
      %v2084 = vpow.pop %v2083
      %v2085 = vmul.f32 %v1981, 1.442695
      %v2086 = vpow.pop %v2085
      %v2087 = vmul.f32 %v1982, 1.442695
      %v2088 = vpow.pop %v2087
      %v2089 = vmul.f32 %v1983, 1.442695
      %v2090 = vpow.pop %v2089
      %v2091 = vmul.f32 %v1984, 1.442695
      %v2092 = vpow.pop %v2091
      %v2093 = vmul.f32 %v1985, 1.442695
      %v2094 = vpow.pop %v2093
      %v2095 = vmul.f32 %v1986, 1.442695
      %v2096 = vpow.pop %v2095
      %v2097 = vmul.f32 %v1987, 1.442695
      %v2098 = vpow.pop %v2097
      %v2099 = vmul.f32 %v1988, 1.442695
      %v2100 = vpow.pop %v2099
      %v2101 = vmul.f32 %v1989, 1.442695
      %v2102 = vpow.pop %v2101
      %v2103 = vmul.f32 %v1990, 1.442695
      %v2104 = vpow.pop %v2103
      %v2105 = vmul.f32 %v1991, 1.442695
      %v2106 = vpow.pop %v2105
      %v2107 = vmul.f32 %v1992, 1.442695
      %v2108 = vpow.pop %v2107
      %v2109 = vmul.f32 %v1993, 1.442695
      %v2110 = vpow.pop %v2109
      %v2111 = vmul.f32 %v1994, 1.442695
      %v2112 = vpow.pop %v2111
      %v2113 = vmul.f32 %v1995, 1.442695
      %v2114 = vpow.pop %v2113
      %v2115 = vmul.f32 %v1996, 1.442695
      %v2116 = vpow.pop %v2115
      %v2117 = vmul.f32 %v1997, 1.442695
      %v2118 = vpow.pop %v2117
      %v2119 = vmul.f32 %v1998, 1.442695
      %v2120 = vpow.pop %v2119
      %v2121 = vmul.f32 %v1999, 1.442695
      %v2122 = vpow.pop %v2121
      %v2123 = vmul.f32 %v2000, 1.442695
      %v2124 = vpow.pop %v2123
      %v2125 = vmul.f32 %v2001, 1.442695
      %v2126 = vpow.pop %v2125
      %v2127 = vmul.f32 %v2002, 1.442695
      %v2128 = vpow.pop %v2127
      %v2129 = vmul.f32 %v2003, 1.442695
      %v2130 = vpow.pop %v2129
      %v2131 = vmul.f32 %v2004, 1.442695
      %v2132 = vpow.pop %v2131
      %v2133 = vadd.f32 %v2006, %v2008
      %2134 = vadd.xlane.f32.xlu0 %v2133
      %v2135 = vpop.xlane.xlu0 %2134
      %v2136 = vadd.f32 %v2010, %v2012
      %2137 = vadd.xlane.f32.xlu0 %v2136
      %v2138 = vpop.xlane.xlu0 %2137
      %v2139 = vadd.f32 %v2014, %v2016
      %2140 = vadd.xlane.f32.xlu0 %v2139
      %v2141 = vpop.xlane.xlu0 %2140
      %v2142 = vadd.f32 %v2018, %v2020
      %2143 = vadd.xlane.f32.xlu0 %v2142
      %v2144 = vpop.xlane.xlu0 %2143
      %v2145 = vadd.f32 %v2022, %v2024
      %2146 = vadd.xlane.f32.xlu0 %v2145
      %v2147 = vpop.xlane.xlu0 %2146
      %v2148 = vadd.f32 %v2026, %v2028
      %2149 = vadd.xlane.f32.xlu0 %v2148
      %v2150 = vpop.xlane.xlu0 %2149
      %v2151 = vadd.f32 %v2030, %v2032
      %2152 = vadd.xlane.f32.xlu0 %v2151
      %v2153 = vpop.xlane.xlu0 %2152
      %v2154 = vadd.f32 %v2034, %v2036
      %2155 = vadd.xlane.f32.xlu0 %v2154
      %v2156 = vpop.xlane.xlu0 %2155
      %v2157 = vadd.f32 %v2038, %v2040
      %2158 = vadd.xlane.f32.xlu0 %v2157
      %v2159 = vpop.xlane.xlu0 %2158
      %v2160 = vadd.f32 %v2042, %v2044
      %2161 = vadd.xlane.f32.xlu0 %v2160
      %v2162 = vpop.xlane.xlu0 %2161
      %v2163 = vadd.f32 %v2046, %v2048
      %2164 = vadd.xlane.f32.xlu0 %v2163
      %v2165 = vpop.xlane.xlu0 %2164
      %v2166 = vadd.f32 %v2050, %v2052
      %2167 = vadd.xlane.f32.xlu0 %v2166
      %v2168 = vpop.xlane.xlu0 %2167
      %v2169 = vadd.f32 %v2054, %v2056
      %2170 = vadd.xlane.f32.xlu0 %v2169
      %v2171 = vpop.xlane.xlu0 %2170
      %v2172 = vadd.f32 %v2058, %v2060
      %2173 = vadd.xlane.f32.xlu0 %v2172
      %v2174 = vpop.xlane.xlu0 %2173
      %v2175 = vadd.f32 %v2062, %v2064
      %2176 = vadd.xlane.f32.xlu0 %v2175
      %v2177 = vpop.xlane.xlu0 %2176
      %v2178 = vadd.f32 %v2066, %v2068
      %2179 = vadd.xlane.f32.xlu0 %v2178
      %v2180 = vpop.xlane.xlu0 %2179
      %v2181 = vadd.f32 %v2070, %v2072
      %2182 = vadd.xlane.f32.xlu0 %v2181
      %v2183 = vpop.xlane.xlu0 %2182
      %v2184 = vadd.f32 %v2074, %v2076
      %2185 = vadd.xlane.f32.xlu0 %v2184
      %v2186 = vpop.xlane.xlu0 %2185
      %v2187 = vadd.f32 %v2078, %v2080
      %2188 = vadd.xlane.f32.xlu0 %v2187
      %v2189 = vpop.xlane.xlu0 %2188
      %v2190 = vadd.f32 %v2082, %v2084
      %2191 = vadd.xlane.f32.xlu0 %v2190
      %v2192 = vpop.xlane.xlu0 %2191
      %v2193 = vadd.f32 %v2086, %v2088
      %2194 = vadd.xlane.f32.xlu0 %v2193
      %v2195 = vpop.xlane.xlu0 %2194
      %v2196 = vadd.f32 %v2090, %v2092
      %2197 = vadd.xlane.f32.xlu0 %v2196
      %v2198 = vpop.xlane.xlu0 %2197
      %v2199 = vadd.f32 %v2094, %v2096
      %2200 = vadd.xlane.f32.xlu0 %v2199
      %v2201 = vpop.xlane.xlu0 %2200
      %v2202 = vadd.f32 %v2098, %v2100
      %2203 = vadd.xlane.f32.xlu0 %v2202
      %v2204 = vpop.xlane.xlu0 %2203
      %v2205 = vadd.f32 %v2102, %v2104
      %2206 = vadd.xlane.f32.xlu0 %v2205
      %v2207 = vpop.xlane.xlu0 %2206
      %v2208 = vadd.f32 %v2106, %v2108
      %2209 = vadd.xlane.f32.xlu0 %v2208
      %v2210 = vpop.xlane.xlu0 %2209
      %v2211 = vadd.f32 %v2110, %v2112
      %2212 = vadd.xlane.f32.xlu0 %v2211
      %v2213 = vpop.xlane.xlu0 %2212
      %v2214 = vadd.f32 %v2114, %v2116
      %2215 = vadd.xlane.f32.xlu0 %v2214
      %v2216 = vpop.xlane.xlu0 %2215
      %v2217 = vadd.f32 %v2118, %v2120
      %2218 = vadd.xlane.f32.xlu0 %v2217
      %v2219 = vpop.xlane.xlu0 %2218
      %v2220 = vadd.f32 %v2122, %v2124
      %2221 = vadd.xlane.f32.xlu0 %v2220
      %v2222 = vpop.xlane.xlu0 %2221
      %v2223 = vadd.f32 %v2126, %v2128
      %2224 = vadd.xlane.f32.xlu0 %v2223
      %v2225 = vpop.xlane.xlu0 %2224
      %v2226 = vadd.f32 %v2130, %v2132
      %2227 = vadd.xlane.f32.xlu0 %v2226
      %v2228 = vpop.xlane.xlu0 %2227
      %v2229 = vrcp.pop %v2135
      %v2230 = vrcp.pop %v2138
      %v2231 = vrcp.pop %v2141
      %v2232 = vrcp.pop %v2144
      %v2233 = vrcp.pop %v2147
      %v2234 = vrcp.pop %v2150
      %v2235 = vrcp.pop %v2153
      %v2236 = vrcp.pop %v2156
      %v2237 = vrcp.pop %v2159
      %v2238 = vrcp.pop %v2162
      %v2239 = vrcp.pop %v2165
      %v2240 = vrcp.pop %v2168
      %v2241 = vrcp.pop %v2171
      %v2242 = vrcp.pop %v2174
      %v2243 = vrcp.pop %v2177
      %v2244 = vrcp.pop %v2180
      %v2245 = vrcp.pop %v2183
      %v2246 = vrcp.pop %v2186
      %v2247 = vrcp.pop %v2189
      %v2248 = vrcp.pop %v2192
      %v2249 = vrcp.pop %v2195
      %v2250 = vrcp.pop %v2198
      %v2251 = vrcp.pop %v2201
      %v2252 = vrcp.pop %v2204
      %v2253 = vrcp.pop %v2207
      %v2254 = vrcp.pop %v2210
      %v2255 = vrcp.pop %v2213
      %v2256 = vrcp.pop %v2216
      %v2257 = vrcp.pop %v2219
      %v2258 = vrcp.pop %v2222
      %v2259 = vrcp.pop %v2225
      %v2260 = vrcp.pop %v2228
      %v2261 = vmul.f32 %v2006, %v2229
      %v2262 = vmul.f32 %v2008, %v2229
      %v2263 = vmul.f32 %v2010, %v2230
      %v2264 = vmul.f32 %v2012, %v2230
      %v2265 = vmul.f32 %v2014, %v2231
      %v2266 = vmul.f32 %v2016, %v2231
      %v2267 = vmul.f32 %v2018, %v2232
      %v2268 = vmul.f32 %v2020, %v2232
      %v2269 = vmul.f32 %v2022, %v2233
      %v2270 = vmul.f32 %v2024, %v2233
      %v2271 = vmul.f32 %v2026, %v2234
      %v2272 = vmul.f32 %v2028, %v2234
      %v2273 = vmul.f32 %v2030, %v2235
      %v2274 = vmul.f32 %v2032, %v2235
      %v2275 = vmul.f32 %v2034, %v2236
      %v2276 = vmul.f32 %v2036, %v2236
      %v2277 = vmul.f32 %v2038, %v2237
      %v2278 = vmul.f32 %v2040, %v2237
      %v2279 = vmul.f32 %v2042, %v2238
      %v2280 = vmul.f32 %v2044, %v2238
      %v2281 = vmul.f32 %v2046, %v2239
      %v2282 = vmul.f32 %v2048, %v2239
      %v2283 = vmul.f32 %v2050, %v2240
      %v2284 = vmul.f32 %v2052, %v2240
      %v2285 = vmul.f32 %v2054, %v2241
      %v2286 = vmul.f32 %v2056, %v2241
      %v2287 = vmul.f32 %v2058, %v2242
      %v2288 = vmul.f32 %v2060, %v2242
      %v2289 = vmul.f32 %v2062, %v2243
      %v2290 = vmul.f32 %v2064, %v2243
      %v2291 = vmul.f32 %v2066, %v2244
      %v2292 = vmul.f32 %v2068, %v2244
      %v2293 = vmul.f32 %v2070, %v2245
      %v2294 = vmul.f32 %v2072, %v2245
      %v2295 = vmul.f32 %v2074, %v2246
      %v2296 = vmul.f32 %v2076, %v2246
      %v2297 = vmul.f32 %v2078, %v2247
      %v2298 = vmul.f32 %v2080, %v2247
      %v2299 = vmul.f32 %v2082, %v2248
      %v2300 = vmul.f32 %v2084, %v2248
      %v2301 = vmul.f32 %v2086, %v2249
      %v2302 = vmul.f32 %v2088, %v2249
      %v2303 = vmul.f32 %v2090, %v2250
      %v2304 = vmul.f32 %v2092, %v2250
      %v2305 = vmul.f32 %v2094, %v2251
      %v2306 = vmul.f32 %v2096, %v2251
      %v2307 = vmul.f32 %v2098, %v2252
      %v2308 = vmul.f32 %v2100, %v2252
      %v2309 = vmul.f32 %v2102, %v2253
      %v2310 = vmul.f32 %v2104, %v2253
      %v2311 = vmul.f32 %v2106, %v2254
      %v2312 = vmul.f32 %v2108, %v2254
      %v2313 = vmul.f32 %v2110, %v2255
      %v2314 = vmul.f32 %v2112, %v2255
      %v2315 = vmul.f32 %v2114, %v2256
      %v2316 = vmul.f32 %v2116, %v2256
      %v2317 = vmul.f32 %v2118, %v2257
      %v2318 = vmul.f32 %v2120, %v2257
      %v2319 = vmul.f32 %v2122, %v2258
      %v2320 = vmul.f32 %v2124, %v2258
      %v2321 = vmul.f32 %v2126, %v2259
      %v2322 = vmul.f32 %v2128, %v2259
      %v2323 = vmul.f32 %v2130, %v2260
      %v2324 = vmul.f32 %v2132, %v2260
      %v2325 = vsel %vm1717, %v1303, -1e+30
      %v2326 = vsel %vm1718, %v1304, -1e+30
      %v2327 = vsel %vm1719, %v1305, -1e+30
      %v2328 = vsel %vm1720, %v1306, -1e+30
      %v2329 = vsel %vm1721, %v1307, -1e+30
      %v2330 = vsel %vm1722, %v1308, -1e+30
      %v2331 = vsel %vm1723, %v1309, -1e+30
      %v2332 = vsel %vm1724, %v1310, -1e+30
      %v2333 = vsel %vm1725, %v1311, -1e+30
      %v2334 = vsel %vm1726, %v1312, -1e+30
      %v2335 = vsel %vm1727, %v1313, -1e+30
      %v2336 = vsel %vm1728, %v1314, -1e+30
      %v2337 = vsel %vm1729, %v1315, -1e+30
      %v2338 = vsel %vm1730, %v1316, -1e+30
      %v2339 = vsel %vm1731, %v1317, -1e+30
      %v2340 = vsel %vm1732, %v1318, -1e+30
      %v2341 = vsel %vm1733, %v1319, -1e+30
      %v2342 = vsel %vm1734, %v1320, -1e+30
      %v2343 = vsel %vm1735, %v1321, -1e+30
      %v2344 = vsel %vm1736, %v1322, -1e+30
      %v2345 = vsel %vm1737, %v1323, -1e+30
      %v2346 = vsel %vm1738, %v1324, -1e+30
      %v2347 = vsel %vm1739, %v1325, -1e+30
      %v2348 = vsel %vm1740, %v1326, -1e+30
      %v2349 = vsel %vm1741, %v1327, -1e+30
      %v2350 = vsel %vm1742, %v1328, -1e+30
      %v2351 = vsel %vm1743, %v1329, -1e+30
      %v2352 = vsel %vm1744, %v1330, -1e+30
      %v2353 = vsel %vm1745, %v1331, -1e+30
      %v2354 = vsel %vm1746, %v1332, -1e+30
      %v2355 = vsel %vm1747, %v1333, -1e+30
      %v2356 = vsel %vm1748, %v1334, -1e+30
      %v2357 = vsel %vm1749, %v1335, -1e+30
      %v2358 = vsel %vm1750, %v1336, -1e+30
      %v2359 = vsel %vm1751, %v1337, -1e+30
      %v2360 = vsel %vm1752, %v1338, -1e+30
      %v2361 = vsel %vm1753, %v1339, -1e+30
      %v2362 = vsel %vm1754, %v1340, -1e+30
      %v2363 = vsel %vm1755, %v1341, -1e+30
      %v2364 = vsel %vm1756, %v1342, -1e+30
      %v2365 = vsel %vm1757, %v1343, -1e+30
      %v2366 = vsel %vm1758, %v1344, -1e+30
      %v2367 = vsel %vm1759, %v1345, -1e+30
      %v2368 = vsel %vm1760, %v1346, -1e+30
      %v2369 = vsel %vm1761, %v1347, -1e+30
      %v2370 = vsel %vm1762, %v1348, -1e+30
      %v2371 = vsel %vm1763, %v1349, -1e+30
      %v2372 = vsel %vm1764, %v1350, -1e+30
      %v2373 = vsel %vm1765, %v1351, -1e+30
      %v2374 = vsel %vm1766, %v1352, -1e+30
      %v2375 = vsel %vm1767, %v1353, -1e+30
      %v2376 = vsel %vm1768, %v1354, -1e+30
      %v2377 = vsel %vm1769, %v1355, -1e+30
      %v2378 = vsel %vm1770, %v1356, -1e+30
      %v2379 = vsel %vm1771, %v1357, -1e+30
      %v2380 = vsel %vm1772, %v1358, -1e+30
      %v2381 = vsel %vm1773, %v1359, -1e+30
      %v2382 = vsel %vm1774, %v1360, -1e+30
      %v2383 = vsel %vm1775, %v1361, -1e+30
      %v2384 = vsel %vm1776, %v1362, -1e+30
      %v2385 = vsel %vm1777, %v1363, -1e+30
      %v2386 = vsel %vm1778, %v1364, -1e+30
      %v2387 = vsel %vm1779, %v1365, -1e+30
      %v2388 = vsel %vm1780, %v1366, -1e+30
      %v2389 = vmax.f32 %v2325, %v2326
      %2390 = vmax.xlane.f32.xlu0 %v2389
      %v2391 = vpop.xlane.xlu0 %2390
      %v2392 = vmax.f32 %v2327, %v2328
      %2393 = vmax.xlane.f32.xlu0 %v2392
      %v2394 = vpop.xlane.xlu0 %2393
      %v2395 = vmax.f32 %v2329, %v2330
      %2396 = vmax.xlane.f32.xlu0 %v2395
      %v2397 = vpop.xlane.xlu0 %2396
      %v2398 = vmax.f32 %v2331, %v2332
      %2399 = vmax.xlane.f32.xlu0 %v2398
      %v2400 = vpop.xlane.xlu0 %2399
      %v2401 = vmax.f32 %v2333, %v2334
      %2402 = vmax.xlane.f32.xlu0 %v2401
      %v2403 = vpop.xlane.xlu0 %2402
      %v2404 = vmax.f32 %v2335, %v2336
      %2405 = vmax.xlane.f32.xlu0 %v2404
      %v2406 = vpop.xlane.xlu0 %2405
      %v2407 = vmax.f32 %v2337, %v2338
      %2408 = vmax.xlane.f32.xlu0 %v2407
      %v2409 = vpop.xlane.xlu0 %2408
      %v2410 = vmax.f32 %v2339, %v2340
      %2411 = vmax.xlane.f32.xlu0 %v2410
      %v2412 = vpop.xlane.xlu0 %2411
      %v2413 = vmax.f32 %v2341, %v2342
      %2414 = vmax.xlane.f32.xlu0 %v2413
      %v2415 = vpop.xlane.xlu0 %2414
      %v2416 = vmax.f32 %v2343, %v2344
      %2417 = vmax.xlane.f32.xlu0 %v2416
      %v2418 = vpop.xlane.xlu0 %2417
      %v2419 = vmax.f32 %v2345, %v2346
      %2420 = vmax.xlane.f32.xlu0 %v2419
      %v2421 = vpop.xlane.xlu0 %2420
      %v2422 = vmax.f32 %v2347, %v2348
      %2423 = vmax.xlane.f32.xlu0 %v2422
      %v2424 = vpop.xlane.xlu0 %2423
      %v2425 = vmax.f32 %v2349, %v2350
      %2426 = vmax.xlane.f32.xlu0 %v2425
      %v2427 = vpop.xlane.xlu0 %2426
      %v2428 = vmax.f32 %v2351, %v2352
      %2429 = vmax.xlane.f32.xlu0 %v2428
      %v2430 = vpop.xlane.xlu0 %2429
      %v2431 = vmax.f32 %v2353, %v2354
      %2432 = vmax.xlane.f32.xlu0 %v2431
      %v2433 = vpop.xlane.xlu0 %2432
      %v2434 = vmax.f32 %v2355, %v2356
      %2435 = vmax.xlane.f32.xlu0 %v2434
      %v2436 = vpop.xlane.xlu0 %2435
      %v2437 = vmax.f32 %v2357, %v2358
      %2438 = vmax.xlane.f32.xlu0 %v2437
      %v2439 = vpop.xlane.xlu0 %2438
      %v2440 = vmax.f32 %v2359, %v2360
      %2441 = vmax.xlane.f32.xlu0 %v2440
      %v2442 = vpop.xlane.xlu0 %2441
      %v2443 = vmax.f32 %v2361, %v2362
      %2444 = vmax.xlane.f32.xlu0 %v2443
      %v2445 = vpop.xlane.xlu0 %2444
      %v2446 = vmax.f32 %v2363, %v2364
      %2447 = vmax.xlane.f32.xlu0 %v2446
      %v2448 = vpop.xlane.xlu0 %2447
      %v2449 = vmax.f32 %v2365, %v2366
      %2450 = vmax.xlane.f32.xlu0 %v2449
      %v2451 = vpop.xlane.xlu0 %2450
      %v2452 = vmax.f32 %v2367, %v2368
      %2453 = vmax.xlane.f32.xlu0 %v2452
      %v2454 = vpop.xlane.xlu0 %2453
      %v2455 = vmax.f32 %v2369, %v2370
      %2456 = vmax.xlane.f32.xlu0 %v2455
      %v2457 = vpop.xlane.xlu0 %2456
      %v2458 = vmax.f32 %v2371, %v2372
      %2459 = vmax.xlane.f32.xlu0 %v2458
      %v2460 = vpop.xlane.xlu0 %2459
      %v2461 = vmax.f32 %v2373, %v2374
      %2462 = vmax.xlane.f32.xlu0 %v2461
      %v2463 = vpop.xlane.xlu0 %2462
      %v2464 = vmax.f32 %v2375, %v2376
      %2465 = vmax.xlane.f32.xlu0 %v2464
      %v2466 = vpop.xlane.xlu0 %2465
      %v2467 = vmax.f32 %v2377, %v2378
      %2468 = vmax.xlane.f32.xlu0 %v2467
      %v2469 = vpop.xlane.xlu0 %2468
      %v2470 = vmax.f32 %v2379, %v2380
      %2471 = vmax.xlane.f32.xlu0 %v2470
      %v2472 = vpop.xlane.xlu0 %2471
      %v2473 = vmax.f32 %v2381, %v2382
      %2474 = vmax.xlane.f32.xlu0 %v2473
      %v2475 = vpop.xlane.xlu0 %2474
      %v2476 = vmax.f32 %v2383, %v2384
      %2477 = vmax.xlane.f32.xlu0 %v2476
      %v2478 = vpop.xlane.xlu0 %2477
      %v2479 = vmax.f32 %v2385, %v2386
      %2480 = vmax.xlane.f32.xlu0 %v2479
      %v2481 = vpop.xlane.xlu0 %2480
      %v2482 = vmax.f32 %v2387, %v2388
      %2483 = vmax.xlane.f32.xlu0 %v2482
      %v2484 = vpop.xlane.xlu0 %2483
      %v2485 = vsub.f32 %v2325, %v2391
      %v2486 = vsub.f32 %v2326, %v2391
      %v2487 = vsub.f32 %v2327, %v2394
      %v2488 = vsub.f32 %v2328, %v2394
      %v2489 = vsub.f32 %v2329, %v2397
      %v2490 = vsub.f32 %v2330, %v2397
      %v2491 = vsub.f32 %v2331, %v2400
      %v2492 = vsub.f32 %v2332, %v2400
      %v2493 = vsub.f32 %v2333, %v2403
      %v2494 = vsub.f32 %v2334, %v2403
      %v2495 = vsub.f32 %v2335, %v2406
      %v2496 = vsub.f32 %v2336, %v2406
      %v2497 = vsub.f32 %v2337, %v2409
      %v2498 = vsub.f32 %v2338, %v2409
      %v2499 = vsub.f32 %v2339, %v2412
      %v2500 = vsub.f32 %v2340, %v2412
      %v2501 = vsub.f32 %v2341, %v2415
      %v2502 = vsub.f32 %v2342, %v2415
      %v2503 = vsub.f32 %v2343, %v2418
      %v2504 = vsub.f32 %v2344, %v2418
      %v2505 = vsub.f32 %v2345, %v2421
      %v2506 = vsub.f32 %v2346, %v2421
      %v2507 = vsub.f32 %v2347, %v2424
      %v2508 = vsub.f32 %v2348, %v2424
      %v2509 = vsub.f32 %v2349, %v2427
      %v2510 = vsub.f32 %v2350, %v2427
      %v2511 = vsub.f32 %v2351, %v2430
      %v2512 = vsub.f32 %v2352, %v2430
      %v2513 = vsub.f32 %v2353, %v2433
      %v2514 = vsub.f32 %v2354, %v2433
      %v2515 = vsub.f32 %v2355, %v2436
      %v2516 = vsub.f32 %v2356, %v2436
      %v2517 = vsub.f32 %v2357, %v2439
      %v2518 = vsub.f32 %v2358, %v2439
      %v2519 = vsub.f32 %v2359, %v2442
      %v2520 = vsub.f32 %v2360, %v2442
      %v2521 = vsub.f32 %v2361, %v2445
      %v2522 = vsub.f32 %v2362, %v2445
      %v2523 = vsub.f32 %v2363, %v2448
      %v2524 = vsub.f32 %v2364, %v2448
      %v2525 = vsub.f32 %v2365, %v2451
      %v2526 = vsub.f32 %v2366, %v2451
      %v2527 = vsub.f32 %v2367, %v2454
      %v2528 = vsub.f32 %v2368, %v2454
      %v2529 = vsub.f32 %v2369, %v2457
      %v2530 = vsub.f32 %v2370, %v2457
      %v2531 = vsub.f32 %v2371, %v2460
      %v2532 = vsub.f32 %v2372, %v2460
      %v2533 = vsub.f32 %v2373, %v2463
      %v2534 = vsub.f32 %v2374, %v2463
      %v2535 = vsub.f32 %v2375, %v2466
      %v2536 = vsub.f32 %v2376, %v2466
      %v2537 = vsub.f32 %v2377, %v2469
      %v2538 = vsub.f32 %v2378, %v2469
      %v2539 = vsub.f32 %v2379, %v2472
      %v2540 = vsub.f32 %v2380, %v2472
      %v2541 = vsub.f32 %v2381, %v2475
      %v2542 = vsub.f32 %v2382, %v2475
      %v2543 = vsub.f32 %v2383, %v2478
      %v2544 = vsub.f32 %v2384, %v2478
      %v2545 = vsub.f32 %v2385, %v2481
      %v2546 = vsub.f32 %v2386, %v2481
      %v2547 = vsub.f32 %v2387, %v2484
      %v2548 = vsub.f32 %v2388, %v2484
      %v2549 = vmul.f32 %v2485, 1.442695
      %v2550 = vpow.pop %v2549
      %v2551 = vmul.f32 %v2486, 1.442695
      %v2552 = vpow.pop %v2551
      %v2553 = vmul.f32 %v2487, 1.442695
      %v2554 = vpow.pop %v2553
      %v2555 = vmul.f32 %v2488, 1.442695
      %v2556 = vpow.pop %v2555
      %v2557 = vmul.f32 %v2489, 1.442695
      %v2558 = vpow.pop %v2557
      %v2559 = vmul.f32 %v2490, 1.442695
      %v2560 = vpow.pop %v2559
      %v2561 = vmul.f32 %v2491, 1.442695
      %v2562 = vpow.pop %v2561
      %v2563 = vmul.f32 %v2492, 1.442695
      %v2564 = vpow.pop %v2563
      %v2565 = vmul.f32 %v2493, 1.442695
      %v2566 = vpow.pop %v2565
      %v2567 = vmul.f32 %v2494, 1.442695
      %v2568 = vpow.pop %v2567
      %v2569 = vmul.f32 %v2495, 1.442695
      %v2570 = vpow.pop %v2569
      %v2571 = vmul.f32 %v2496, 1.442695
      %v2572 = vpow.pop %v2571
      %v2573 = vmul.f32 %v2497, 1.442695
      %v2574 = vpow.pop %v2573
      %v2575 = vmul.f32 %v2498, 1.442695
      %v2576 = vpow.pop %v2575
      %v2577 = vmul.f32 %v2499, 1.442695
      %v2578 = vpow.pop %v2577
      %v2579 = vmul.f32 %v2500, 1.442695
      %v2580 = vpow.pop %v2579
      %v2581 = vmul.f32 %v2501, 1.442695
      %v2582 = vpow.pop %v2581
      %v2583 = vmul.f32 %v2502, 1.442695
      %v2584 = vpow.pop %v2583
      %v2585 = vmul.f32 %v2503, 1.442695
      %v2586 = vpow.pop %v2585
      %v2587 = vmul.f32 %v2504, 1.442695
      %v2588 = vpow.pop %v2587
      %v2589 = vmul.f32 %v2505, 1.442695
      %v2590 = vpow.pop %v2589
      %v2591 = vmul.f32 %v2506, 1.442695
      %v2592 = vpow.pop %v2591
      %v2593 = vmul.f32 %v2507, 1.442695
      %v2594 = vpow.pop %v2593
      %v2595 = vmul.f32 %v2508, 1.442695
      %v2596 = vpow.pop %v2595
      %v2597 = vmul.f32 %v2509, 1.442695
      %v2598 = vpow.pop %v2597
      %v2599 = vmul.f32 %v2510, 1.442695
      %v2600 = vpow.pop %v2599
      %v2601 = vmul.f32 %v2511, 1.442695
      %v2602 = vpow.pop %v2601
      %v2603 = vmul.f32 %v2512, 1.442695
      %v2604 = vpow.pop %v2603
      %v2605 = vmul.f32 %v2513, 1.442695
      %v2606 = vpow.pop %v2605
      %v2607 = vmul.f32 %v2514, 1.442695
      %v2608 = vpow.pop %v2607
      %v2609 = vmul.f32 %v2515, 1.442695
      %v2610 = vpow.pop %v2609
      %v2611 = vmul.f32 %v2516, 1.442695
      %v2612 = vpow.pop %v2611
      %v2613 = vmul.f32 %v2517, 1.442695
      %v2614 = vpow.pop %v2613
      %v2615 = vmul.f32 %v2518, 1.442695
      %v2616 = vpow.pop %v2615
      %v2617 = vmul.f32 %v2519, 1.442695
      %v2618 = vpow.pop %v2617
      %v2619 = vmul.f32 %v2520, 1.442695
      %v2620 = vpow.pop %v2619
      %v2621 = vmul.f32 %v2521, 1.442695
      %v2622 = vpow.pop %v2621
      %v2623 = vmul.f32 %v2522, 1.442695
      %v2624 = vpow.pop %v2623
      %v2625 = vmul.f32 %v2523, 1.442695
      %v2626 = vpow.pop %v2625
      %v2627 = vmul.f32 %v2524, 1.442695
      %v2628 = vpow.pop %v2627
      %v2629 = vmul.f32 %v2525, 1.442695
      %v2630 = vpow.pop %v2629
      %v2631 = vmul.f32 %v2526, 1.442695
      %v2632 = vpow.pop %v2631
      %v2633 = vmul.f32 %v2527, 1.442695
      %v2634 = vpow.pop %v2633
      %v2635 = vmul.f32 %v2528, 1.442695
      %v2636 = vpow.pop %v2635
      %v2637 = vmul.f32 %v2529, 1.442695
      %v2638 = vpow.pop %v2637
      %v2639 = vmul.f32 %v2530, 1.442695
      %v2640 = vpow.pop %v2639
      %v2641 = vmul.f32 %v2531, 1.442695
      %v2642 = vpow.pop %v2641
      %v2643 = vmul.f32 %v2532, 1.442695
      %v2644 = vpow.pop %v2643
      %v2645 = vmul.f32 %v2533, 1.442695
      %v2646 = vpow.pop %v2645
      %v2647 = vmul.f32 %v2534, 1.442695
      %v2648 = vpow.pop %v2647
      %v2649 = vmul.f32 %v2535, 1.442695
      %v2650 = vpow.pop %v2649
      %v2651 = vmul.f32 %v2536, 1.442695
      %v2652 = vpow.pop %v2651
      %v2653 = vmul.f32 %v2537, 1.442695
      %v2654 = vpow.pop %v2653
      %v2655 = vmul.f32 %v2538, 1.442695
      %v2656 = vpow.pop %v2655
      %v2657 = vmul.f32 %v2539, 1.442695
      %v2658 = vpow.pop %v2657
      %v2659 = vmul.f32 %v2540, 1.442695
      %v2660 = vpow.pop %v2659
      %v2661 = vmul.f32 %v2541, 1.442695
      %v2662 = vpow.pop %v2661
      %v2663 = vmul.f32 %v2542, 1.442695
      %v2664 = vpow.pop %v2663
      %v2665 = vmul.f32 %v2543, 1.442695
      %v2666 = vpow.pop %v2665
      %v2667 = vmul.f32 %v2544, 1.442695
      %v2668 = vpow.pop %v2667
      %v2669 = vmul.f32 %v2545, 1.442695
      %v2670 = vpow.pop %v2669
      %v2671 = vmul.f32 %v2546, 1.442695
      %v2672 = vpow.pop %v2671
      %v2673 = vmul.f32 %v2547, 1.442695
      %v2674 = vpow.pop %v2673
      %v2675 = vmul.f32 %v2548, 1.442695
      %v2676 = vpow.pop %v2675
      %v2677 = vadd.f32 %v2550, %v2552
      %2678 = vadd.xlane.f32.xlu0 %v2677
      %v2679 = vpop.xlane.xlu0 %2678
      %v2680 = vadd.f32 %v2554, %v2556
      %2681 = vadd.xlane.f32.xlu0 %v2680
      %v2682 = vpop.xlane.xlu0 %2681
      %v2683 = vadd.f32 %v2558, %v2560
      %2684 = vadd.xlane.f32.xlu0 %v2683
      %v2685 = vpop.xlane.xlu0 %2684
      %v2686 = vadd.f32 %v2562, %v2564
      %2687 = vadd.xlane.f32.xlu0 %v2686
      %v2688 = vpop.xlane.xlu0 %2687
      %v2689 = vadd.f32 %v2566, %v2568
      %2690 = vadd.xlane.f32.xlu0 %v2689
      %v2691 = vpop.xlane.xlu0 %2690
      %v2692 = vadd.f32 %v2570, %v2572
      %2693 = vadd.xlane.f32.xlu0 %v2692
      %v2694 = vpop.xlane.xlu0 %2693
      %v2695 = vadd.f32 %v2574, %v2576
      %2696 = vadd.xlane.f32.xlu0 %v2695
      %v2697 = vpop.xlane.xlu0 %2696
      %v2698 = vadd.f32 %v2578, %v2580
      %2699 = vadd.xlane.f32.xlu0 %v2698
      %v2700 = vpop.xlane.xlu0 %2699
      %v2701 = vadd.f32 %v2582, %v2584
      %2702 = vadd.xlane.f32.xlu0 %v2701
      %v2703 = vpop.xlane.xlu0 %2702
      %v2704 = vadd.f32 %v2586, %v2588
      %2705 = vadd.xlane.f32.xlu0 %v2704
      %v2706 = vpop.xlane.xlu0 %2705
      %v2707 = vadd.f32 %v2590, %v2592
      %2708 = vadd.xlane.f32.xlu0 %v2707
      %v2709 = vpop.xlane.xlu0 %2708
      %v2710 = vadd.f32 %v2594, %v2596
      %2711 = vadd.xlane.f32.xlu0 %v2710
      %v2712 = vpop.xlane.xlu0 %2711
      %v2713 = vadd.f32 %v2598, %v2600
      %2714 = vadd.xlane.f32.xlu0 %v2713
      %v2715 = vpop.xlane.xlu0 %2714
      %v2716 = vadd.f32 %v2602, %v2604
      %2717 = vadd.xlane.f32.xlu0 %v2716
      %v2718 = vpop.xlane.xlu0 %2717
      %v2719 = vadd.f32 %v2606, %v2608
      %2720 = vadd.xlane.f32.xlu0 %v2719
      %v2721 = vpop.xlane.xlu0 %2720
      %v2722 = vadd.f32 %v2610, %v2612
      %2723 = vadd.xlane.f32.xlu0 %v2722
      %v2724 = vpop.xlane.xlu0 %2723
      %v2725 = vadd.f32 %v2614, %v2616
      %2726 = vadd.xlane.f32.xlu0 %v2725
      %v2727 = vpop.xlane.xlu0 %2726
      %v2728 = vadd.f32 %v2618, %v2620
      %2729 = vadd.xlane.f32.xlu0 %v2728
      %v2730 = vpop.xlane.xlu0 %2729
      %v2731 = vadd.f32 %v2622, %v2624
      %2732 = vadd.xlane.f32.xlu0 %v2731
      %v2733 = vpop.xlane.xlu0 %2732
      %v2734 = vadd.f32 %v2626, %v2628
      %2735 = vadd.xlane.f32.xlu0 %v2734
      %v2736 = vpop.xlane.xlu0 %2735
      %v2737 = vadd.f32 %v2630, %v2632
      %2738 = vadd.xlane.f32.xlu0 %v2737
      %v2739 = vpop.xlane.xlu0 %2738
      %v2740 = vadd.f32 %v2634, %v2636
      %2741 = vadd.xlane.f32.xlu0 %v2740
      %v2742 = vpop.xlane.xlu0 %2741
      %v2743 = vadd.f32 %v2638, %v2640
      %2744 = vadd.xlane.f32.xlu0 %v2743
      %v2745 = vpop.xlane.xlu0 %2744
      %v2746 = vadd.f32 %v2642, %v2644
      %2747 = vadd.xlane.f32.xlu0 %v2746
      %v2748 = vpop.xlane.xlu0 %2747
      %v2749 = vadd.f32 %v2646, %v2648
      %2750 = vadd.xlane.f32.xlu0 %v2749
      %v2751 = vpop.xlane.xlu0 %2750
      %v2752 = vadd.f32 %v2650, %v2652
      %2753 = vadd.xlane.f32.xlu0 %v2752
      %v2754 = vpop.xlane.xlu0 %2753
      %v2755 = vadd.f32 %v2654, %v2656
      %2756 = vadd.xlane.f32.xlu0 %v2755
      %v2757 = vpop.xlane.xlu0 %2756
      %v2758 = vadd.f32 %v2658, %v2660
      %2759 = vadd.xlane.f32.xlu0 %v2758
      %v2760 = vpop.xlane.xlu0 %2759
      %v2761 = vadd.f32 %v2662, %v2664
      %2762 = vadd.xlane.f32.xlu0 %v2761
      %v2763 = vpop.xlane.xlu0 %2762
      %v2764 = vadd.f32 %v2666, %v2668
      %2765 = vadd.xlane.f32.xlu0 %v2764
      %v2766 = vpop.xlane.xlu0 %2765
      %v2767 = vadd.f32 %v2670, %v2672
      %2768 = vadd.xlane.f32.xlu0 %v2767
      %v2769 = vpop.xlane.xlu0 %2768
      %v2770 = vadd.f32 %v2674, %v2676
      %2771 = vadd.xlane.f32.xlu0 %v2770
      %v2772 = vpop.xlane.xlu0 %2771
      %v2773 = vrcp.pop %v2679
      %v2774 = vrcp.pop %v2682
      %v2775 = vrcp.pop %v2685
      %v2776 = vrcp.pop %v2688
      %v2777 = vrcp.pop %v2691
      %v2778 = vrcp.pop %v2694
      %v2779 = vrcp.pop %v2697
      %v2780 = vrcp.pop %v2700
      %v2781 = vrcp.pop %v2703
      %v2782 = vrcp.pop %v2706
      %v2783 = vrcp.pop %v2709
      %v2784 = vrcp.pop %v2712
      %v2785 = vrcp.pop %v2715
      %v2786 = vrcp.pop %v2718
      %v2787 = vrcp.pop %v2721
      %v2788 = vrcp.pop %v2724
      %v2789 = vrcp.pop %v2727
      %v2790 = vrcp.pop %v2730
      %v2791 = vrcp.pop %v2733
      %v2792 = vrcp.pop %v2736
      %v2793 = vrcp.pop %v2739
      %v2794 = vrcp.pop %v2742
      %v2795 = vrcp.pop %v2745
      %v2796 = vrcp.pop %v2748
      %v2797 = vrcp.pop %v2751
      %v2798 = vrcp.pop %v2754
      %v2799 = vrcp.pop %v2757
      %v2800 = vrcp.pop %v2760
      %v2801 = vrcp.pop %v2763
      %v2802 = vrcp.pop %v2766
      %v2803 = vrcp.pop %v2769
      %v2804 = vrcp.pop %v2772
      %v2805 = vmul.f32 %v2550, %v2773
      %v2806 = vmul.f32 %v2552, %v2773
      %v2807 = vmul.f32 %v2554, %v2774
      %v2808 = vmul.f32 %v2556, %v2774
      %v2809 = vmul.f32 %v2558, %v2775
      %v2810 = vmul.f32 %v2560, %v2775
      %v2811 = vmul.f32 %v2562, %v2776
      %v2812 = vmul.f32 %v2564, %v2776
      %v2813 = vmul.f32 %v2566, %v2777
      %v2814 = vmul.f32 %v2568, %v2777
      %v2815 = vmul.f32 %v2570, %v2778
      %v2816 = vmul.f32 %v2572, %v2778
      %v2817 = vmul.f32 %v2574, %v2779
      %v2818 = vmul.f32 %v2576, %v2779
      %v2819 = vmul.f32 %v2578, %v2780
      %v2820 = vmul.f32 %v2580, %v2780
      %v2821 = vmul.f32 %v2582, %v2781
      %v2822 = vmul.f32 %v2584, %v2781
      %v2823 = vmul.f32 %v2586, %v2782
      %v2824 = vmul.f32 %v2588, %v2782
      %v2825 = vmul.f32 %v2590, %v2783
      %v2826 = vmul.f32 %v2592, %v2783
      %v2827 = vmul.f32 %v2594, %v2784
      %v2828 = vmul.f32 %v2596, %v2784
      %v2829 = vmul.f32 %v2598, %v2785
      %v2830 = vmul.f32 %v2600, %v2785
      %v2831 = vmul.f32 %v2602, %v2786
      %v2832 = vmul.f32 %v2604, %v2786
      %v2833 = vmul.f32 %v2606, %v2787
      %v2834 = vmul.f32 %v2608, %v2787
      %v2835 = vmul.f32 %v2610, %v2788
      %v2836 = vmul.f32 %v2612, %v2788
      %v2837 = vmul.f32 %v2614, %v2789
      %v2838 = vmul.f32 %v2616, %v2789
      %v2839 = vmul.f32 %v2618, %v2790
      %v2840 = vmul.f32 %v2620, %v2790
      %v2841 = vmul.f32 %v2622, %v2791
      %v2842 = vmul.f32 %v2624, %v2791
      %v2843 = vmul.f32 %v2626, %v2792
      %v2844 = vmul.f32 %v2628, %v2792
      %v2845 = vmul.f32 %v2630, %v2793
      %v2846 = vmul.f32 %v2632, %v2793
      %v2847 = vmul.f32 %v2634, %v2794
      %v2848 = vmul.f32 %v2636, %v2794
      %v2849 = vmul.f32 %v2638, %v2795
      %v2850 = vmul.f32 %v2640, %v2795
      %v2851 = vmul.f32 %v2642, %v2796
      %v2852 = vmul.f32 %v2644, %v2796
      %v2853 = vmul.f32 %v2646, %v2797
      %v2854 = vmul.f32 %v2648, %v2797
      %v2855 = vmul.f32 %v2650, %v2798
      %v2856 = vmul.f32 %v2652, %v2798
      %v2857 = vmul.f32 %v2654, %v2799
      %v2858 = vmul.f32 %v2656, %v2799
      %v2859 = vmul.f32 %v2658, %v2800
      %v2860 = vmul.f32 %v2660, %v2800
      %v2861 = vmul.f32 %v2662, %v2801
      %v2862 = vmul.f32 %v2664, %v2801
      %v2863 = vmul.f32 %v2666, %v2802
      %v2864 = vmul.f32 %v2668, %v2802
      %v2865 = vmul.f32 %v2670, %v2803
      %v2866 = vmul.f32 %v2672, %v2803
      %v2867 = vmul.f32 %v2674, %v2804
      %v2868 = vmul.f32 %v2676, %v2804
      %v2870 = vcombine.high %v267, %v267
      %2872 = vmatprep.subr.mxu0 %v2836
      %2873 = vmatpush1.xpose.msra.mxu0 %v2835
      %2874 = vmatprep.subr.mxu0 %v2834
      %2875 = vmatpush1.xpose.msra.mxu0 %v2833
      %2876 = vmatprep.subr.mxu0 %v2832
      %2877 = vmatpush1.xpose.msra.mxu0 %v2831
      %2878 = vmatprep.subr.mxu0 %v2830
      %2879 = vmatpush1.xpose.msra.mxu0 %v2829
      %2880 = vmatprep.subr.mxu0 %v2828
      %2881 = vmatpush1.xpose.msra.mxu0 %v2827
      %2882 = vmatprep.subr.mxu0 %v2826
      %2883 = vmatpush1.xpose.msra.mxu0 %v2825
      %2884 = vmatprep.subr.mxu0 %v2824
      %2885 = vmatpush1.xpose.msra.mxu0 %v2823
      %2886 = vmatprep.subr.mxu0 %v2822
      %2887 = vmatpush1.xpose.msra.mxu0 %v2821
      %2888 = vmatprep.subr.mxu0 %v2820
      %2889 = vmatpush1.xpose.msra.mxu0 %v2819
      %2890 = vmatprep.subr.mxu0 %v2818
      %2891 = vmatpush1.xpose.msra.mxu0 %v2817
      %2892 = vmatprep.subr.mxu0 %v2816
      %2893 = vmatpush1.xpose.msra.mxu0 %v2815
      %2894 = vmatprep.subr.mxu0 %v2814
      %2895 = vmatpush1.xpose.msra.mxu0 %v2813
      %2896 = vmatprep.subr.mxu0 %v2812
      %2897 = vmatpush1.xpose.msra.mxu0 %v2811
      %2898 = vmatprep.subr.mxu0 %v2810
      %2899 = vmatpush1.xpose.msra.mxu0 %v2809
      %2900 = vmatprep.subr.mxu0 %v2808
      %2901 = vmatpush1.xpose.msra.mxu0 %v2807
      %2902 = vmatprep.subr.mxu0 %v2806
      %2903 = vmatpush1.xpose.msra.mxu0 %v2805
      %2904 = vmatprep.subr.mxu0 %v2868
      %2905 = vmatpush2.xpose.msra.mxu0 %v2867
      %2906 = vmatprep.subr.mxu0 %v2866
      %2907 = vmatpush2.xpose.msra.mxu0 %v2865
      %2908 = vmatprep.subr.mxu0 %v2864
      %2909 = vmatpush2.xpose.msra.mxu0 %v2863
      %2910 = vmatprep.subr.mxu0 %v2862
      %2911 = vmatpush2.xpose.msra.mxu0 %v2861
      %2912 = vmatprep.subr.mxu0 %v2860
      %2913 = vmatpush2.xpose.msra.mxu0 %v2859
      %2914 = vmatprep.subr.mxu0 %v2858
      %2915 = vmatpush2.xpose.msra.mxu0 %v2857
      %2916 = vmatprep.subr.mxu0 %v2856
      %2917 = vmatpush2.xpose.msra.mxu0 %v2855
      %2918 = vmatprep.subr.mxu0 %v2854
      %2919 = vmatpush2.xpose.msra.mxu0 %v2853
      %2920 = vmatprep.subr.mxu0 %v2852
      %2921 = vmatpush2.xpose.msra.mxu0 %v2851
      %2922 = vmatprep.subr.mxu0 %v2850
      %2923 = vmatpush2.xpose.msra.mxu0 %v2849
      %2924 = vmatprep.subr.mxu0 %v2848
      %2925 = vmatpush2.xpose.msra.mxu0 %v2847
      %2926 = vmatprep.subr.mxu0 %v2846
      %2927 = vmatpush2.xpose.msra.mxu0 %v2845
      %2928 = vmatprep.subr.mxu0 %v2844
      %2929 = vmatpush2.xpose.msra.mxu0 %v2843
      %2930 = vmatprep.subr.mxu0 %v2842
      %2931 = vmatpush2.xpose.msra.mxu0 %v2841
      %2932 = vmatprep.subr.mxu0 %v2840
      %2933 = vmatpush2.xpose.msra.mxu0 %v2839
      %2934 = vmatprep.subr.mxu0 %v2838
      %2935 = vmatpush2.xpose.msra.mxu0 %v2837
      %2936 = vmatprep.mubr.f32.mxu0 %v2870
      %2937 = vmatmul.mubr.f32.gmra.mxu0 %v267
      %v2938 = vpop.f32.mrf.mxu0
      %v2939 = vadd.f32 0.0, %v2938
      %v2940 = vpop.f32.mrf.mxu0
      %v2941 = vadd.f32 0.0, %v2940
      %2942 = vdwg.mxu0
      %2943 = vmatprep.subr.mxu0 %v2292
      %2944 = vmatpush1.xpose.msra.mxu0 %v2291
      %2945 = vmatprep.subr.mxu0 %v2290
      %2946 = vmatpush1.xpose.msra.mxu0 %v2289
      %2947 = vmatprep.subr.mxu0 %v2288
      %2948 = vmatpush1.xpose.msra.mxu0 %v2287
      %2949 = vmatprep.subr.mxu0 %v2286
      %2950 = vmatpush1.xpose.msra.mxu0 %v2285
      %2951 = vmatprep.subr.mxu0 %v2284
      %2952 = vmatpush1.xpose.msra.mxu0 %v2283
      %2953 = vmatprep.subr.mxu0 %v2282
      %2954 = vmatpush1.xpose.msra.mxu0 %v2281
      %2955 = vmatprep.subr.mxu0 %v2280
      %2956 = vmatpush1.xpose.msra.mxu0 %v2279
      %2957 = vmatprep.subr.mxu0 %v2278
      %2958 = vmatpush1.xpose.msra.mxu0 %v2277
      %2959 = vmatprep.subr.mxu0 %v2276
      %2960 = vmatpush1.xpose.msra.mxu0 %v2275
      %2961 = vmatprep.subr.mxu0 %v2274
      %2962 = vmatpush1.xpose.msra.mxu0 %v2273
      %2963 = vmatprep.subr.mxu0 %v2272
      %2964 = vmatpush1.xpose.msra.mxu0 %v2271
      %2965 = vmatprep.subr.mxu0 %v2270
      %2966 = vmatpush1.xpose.msra.mxu0 %v2269
      %2967 = vmatprep.subr.mxu0 %v2268
      %2968 = vmatpush1.xpose.msra.mxu0 %v2267
      %2969 = vmatprep.subr.mxu0 %v2266
      %2970 = vmatpush1.xpose.msra.mxu0 %v2265
      %2971 = vmatprep.subr.mxu0 %v2264
      %2972 = vmatpush1.xpose.msra.mxu0 %v2263
      %2973 = vmatprep.subr.mxu0 %v2262
      %2974 = vmatpush1.xpose.msra.mxu0 %v2261
      %2975 = vmatprep.subr.mxu0 %v2324
      %2976 = vmatpush2.xpose.msra.mxu0 %v2323
      %2977 = vmatprep.subr.mxu0 %v2322
      %2978 = vmatpush2.xpose.msra.mxu0 %v2321
      %2979 = vmatprep.subr.mxu0 %v2320
      %2980 = vmatpush2.xpose.msra.mxu0 %v2319
      %2981 = vmatprep.subr.mxu0 %v2318
      %2982 = vmatpush2.xpose.msra.mxu0 %v2317
      %2983 = vmatprep.subr.mxu0 %v2316
      %2984 = vmatpush2.xpose.msra.mxu0 %v2315
      %2985 = vmatprep.subr.mxu0 %v2314
      %2986 = vmatpush2.xpose.msra.mxu0 %v2313
      %2987 = vmatprep.subr.mxu0 %v2312
      %2988 = vmatpush2.xpose.msra.mxu0 %v2311
      %2989 = vmatprep.subr.mxu0 %v2310
      %2990 = vmatpush2.xpose.msra.mxu0 %v2309
      %2991 = vmatprep.subr.mxu0 %v2308
      %2992 = vmatpush2.xpose.msra.mxu0 %v2307
      %2993 = vmatprep.subr.mxu0 %v2306
      %2994 = vmatpush2.xpose.msra.mxu0 %v2305
      %2995 = vmatprep.subr.mxu0 %v2304
      %2996 = vmatpush2.xpose.msra.mxu0 %v2303
      %2997 = vmatprep.subr.mxu0 %v2302
      %2998 = vmatpush2.xpose.msra.mxu0 %v2301
      %2999 = vmatprep.subr.mxu0 %v2300
      %3000 = vmatpush2.xpose.msra.mxu0 %v2299
      %3001 = vmatprep.subr.mxu0 %v2298
      %3002 = vmatpush2.xpose.msra.mxu0 %v2297
      %3003 = vmatprep.subr.mxu0 %v2296
      %3004 = vmatpush2.xpose.msra.mxu0 %v2295
      %3005 = vmatprep.subr.mxu0 %v2294
      %3006 = vmatpush2.xpose.msra.mxu0 %v2293
      %3007 = vmatprep.mubr.f32.mxu0 %v2870
      %3008 = vmatmul.mubr.f32.gmra.mxu0 %v267
      %v3009 = vpop.f32.mrf.mxu0
      %v3010 = vadd.f32 %v2939, %v3009
      %v3011 = vpop.f32.mrf.mxu0
      %v3012 = vadd.f32 %v2941, %v3011
      %3013 = vdwg.mxu0
      %v3016 = vcombine.low %v3010, %v3012
      %3018 = vst [vmem:[%s264] sm:$0xff] %v3016
      %p3019 = scmp.lt.s32.totalorder %s16, 1
      %s3020 = scalar_select %p3019, %s16, 1
      %s3021 = smul.addr %s3020, 2
      %s3022 = smul.addr %s3021, 4
      %s3023 = scalar_lea.vmem %s5, %s3022
      // Predicated region
      $region41: #{channel_wise_row_column_attention.1} parent=39 // pred_check
        %p3024 = pneg %p154
      $region42: #{channel_wise_row_column_attention.1} parent=39 // pred_check_branch
        %3026 = sbr.rel (%p3024) target = $region44
      $region43: #{channel_wise_row_column_attention.1} parent=39 // pred_region
        _
      $region44: #{channel_wise_row_column_attention.1} parent=39 // pred_fallthru
        _
    $region40: #{channel_wise_row_column_attention.1} parent=5 // pred_fallthru
      _
    %p3027 = scmp.le.s32.totalorder 2, %s11
    // Predicated region
    $region45: #{channel_wise_row_column_attention.1} parent=5 // pred_check
      %p3028 = pneg %p3027
    $region46: #{channel_wise_row_column_attention.1} parent=5 // pred_check_branch
      %3030 = sbr.rel (%p3028) target = $region48
    $region47: #{channel_wise_row_column_attention.1} parent=5 // pred_region
      %s3031 = ssub.s32 %s11, 2
      // Predicated region
      $region49: #{channel_wise_row_column_attention.1} parent=47 // pred_check
        %p3032 = pneg %p160
      $region50: #{channel_wise_row_column_attention.1} parent=47 // pred_check_branch
        %3034 = sbr.rel (%p3032) target = $region52
      $region51: #{channel_wise_row_column_attention.1} parent=47 // pred_region
        %p3035 = scmp.lt.s32.totalorder %s17, 1
        %s3036 = scalar_select %p3035, %s17, 1
        %s3037 = smul.addr %s3036, 2
        %s3038 = smul.addr %s3037, 4
        %s3039 = scalar_lea.vmem %s5, %s3038
      $region52: #{channel_wise_row_column_attention.1} parent=47 // pred_fallthru
        _
    $region48: #{channel_wise_row_column_attention.1} parent=5 // pred_fallthru
      _
  $region6: #{channel_wise_row_column_attention.1} parent=0 // loop_footer
    %s15 = sadd.s32 1, %s11
  $region7: #{channel_wise_row_column_attention.1} parent=0 // loop_footer_branch
    %10 = sbr.rel target = $region3
  $region8: #{channel_wise_row_column_attention.1} parent=0 // loop_exit
    _

</llo_original>
